<compile_context>
chip_gen: v5e
topology: v5e:2x2
jax: 0.10.0
libtpu: 0.0.40
codegen_flags: <defaults>
</compile_context>

<pallas_src>
import math
import functools

import jax
import jax.numpy as jnp
from jax.experimental import pallas as pl
from jax.experimental.pallas import tpu as pltpu


# --------------------------------------------------------------------------- #
# math helpers (shared by kernel and reference)
# --------------------------------------------------------------------------- #
def _erf(x):
    # Abramowitz-Stegun 7.1.26 rational approximation (|err| < 1.5e-7).
    # Matches torch.nn.GELU() (exact erf GELU) to f32 precision while
    # guaranteeing Mosaic lowering (only exp / divide needed).
    a1, a2, a3, a4, a5 = 0.254829592, -0.284496736, 1.421413741, -1.453152027, 1.061405429
    p = 0.3275911
    ax = jnp.abs(x)
    t = 1.0 / (1.0 + p * ax)
    y = 1.0 - (((((a5 * t + a4) * t + a3) * t + a2) * t + a1) * t) * jnp.exp(-ax * ax)
    return jnp.where(x >= 0.0, y, -y)


def _gelu_exact(x):
    return 0.5 * x * (1.0 + _erf(x * (1.0 / math.sqrt(2.0))))


def _layer_norm(x, gamma, beta, eps=1e-5):
    mu = jnp.mean(x, axis=-1, keepdims=True)
    var = jnp.mean((x - mu) ** 2, axis=-1, keepdims=True)
    return (x - mu) * jax.lax.rsqrt(var + eps) * gamma + beta


# --------------------------------------------------------------------------- #
# fused encoder-stack kernel: one grid step = (one batch element, one layer)
# --------------------------------------------------------------------------- #
def _informer_stack_kernel(
    x_ref, wqkv_ref, bqkv_ref, w1_ref, b1_ref, w2_ref, vecs_ref,
    o_ref,
    *, n_heads, u_top,
):
    bf16 = jnp.bfloat16
    f32 = jnp.float32

    # Seed the resident activation (output block, constant over the layer axis)
    # with the input on the first layer of the stack.
    @pl.when(pl.program_id(1) == 0)
    def _():
        o_ref[...] = x_ref[...]

    src = o_ref[0]                                   # (L, D) f32, resident in VMEM
    L, D = src.shape
    dh = D // n_heads

    # ---------------- ProbSparse self-attention (dropout = identity) ---------
    # Fused Q|K|V projection: single MXU pass with N = 3*D.
    qkv = jnp.dot(src.astype(bf16), wqkv_ref[0],
                  preferred_element_type=f32) + bqkv_ref[0]          # (L, 3D) f32
    q = qkv[:, 0 * D:1 * D]
    k = qkv[:, 1 * D:2 * D]
    v = qkv[:, 2 * D:3 * D]
    k_bf = k.astype(bf16)

    # Lane-index grid for per-head column masks (hoisted out of the head loop).
    cols = jax.lax.broadcasted_iota(jnp.int32, (L, D), 1)

    attn_out = jnp.zeros((L, D), f32)
    # n_heads is small & static -> cheap unroll; all heavy loops below are
    # lax.fori_loop so live ranges stay bounded.
    for h in range(n_heads):
        head_mask = (cols >= h * dh) & (cols < (h + 1) * dh)

        # Masked-q trick: zeroing q outside head h makes the full-width (D)
        # contraction identical to the per-head (dh) contraction -> lane-dense
        # MXU operands, no sub-128 lane slicing.
        # (No 1/sqrt(d) scaling -- matches the torch reference.)
        qm = jnp.where(head_mask, q, 0.0).astype(bf16)
        s = jax.lax.dot_general(qm, k_bf, (((1,), (1,)), ((), ())),
                                preferred_element_type=f32)          # (L, S)

        # Top-U threshold per query row: U max-extract passes (O(U*L^2)).
        def _topk_body(_, carry):
            work, _thr = carry
            m = jnp.max(work, axis=-1, keepdims=True)                # (L, 1)
            work = jnp.where(work >= m, -jnp.inf, work)
            return work, m

        _, thr = jax.lax.fori_loop(0, u_top, _topk_body,
                                   (s, jnp.zeros((L, 1), f32)))
        # scatter-onto-zeros semantics of the torch reference (pruned keys = 0)
        sparse = jnp.where(s >= thr, s, 0.0)

        mx = jnp.max(sparse, axis=-1, keepdims=True)
        e = jnp.exp(sparse - mx)
        # one divide per row, S multiplies (approx=True is a drop-in if
        # bit-closeness to the f32 reference is not being asserted)
        attn = e * pl.reciprocal(jnp.sum(e, axis=-1, keepdims=True), approx=False)

        # Masked-v: output columns outside head h are exactly zero, so summing
        # over heads builds the head-concat in one full-lane-width value.
        vm = jnp.where(head_mask, v, 0.0).astype(bf16)
        attn_out = attn_out + jnp.dot(attn.astype(bf16), vm,
                                      preferred_element_type=f32)    # (L, D)

    # ---------------- packed small vectors ------------------------------------
    vecs = vecs_ref[0]                               # (5, D): b2, g1, be1, g2, be2
    b2 = vecs[0:1, :]
    g1 = vecs[1:2, :]
    be1 = vecs[2:3, :]
    g2 = vecs[3:4, :]
    be2 = vecs[4:5, :]

    # ---------------- residual + LayerNorm 1 ---------------------------------
    src = _layer_norm(src + attn_out, g1, be1)

    # ---------------- FFN: Linear -> GELU(exact erf) -> Linear ---------------
    h1 = jnp.dot(src.astype(bf16), w1_ref[0], preferred_element_type=f32) + b1_ref[0]
    h1 = _gelu_exact(h1)
    h2 = jnp.dot(h1.astype(bf16), w2_ref[0], preferred_element_type=f32) + b2

    # ---------------- residual + LayerNorm 2, write resident activation ------
    o_ref[0] = _layer_norm(src + h2, g2, be2)


def informer_encoder(x, P, *, n_heads, factor):
    """x: (B, L, D) f32.  P: dict of stacked per-layer params (see init_params)."""
    B, L, D = x.shape
    num_layers = P["wqkv"].shape[0]
    dff = P["w1"].shape[-1]
    u_top = int(factor * math.log(L))
    assert 0 < u_top <= L, "factor*log(L) must give 0 < U <= L (torch.topk constraint)"
    assert D % n_heads == 0

    kernel = functools.partial(_informer_stack_kernel, n_heads=n_heads, u_top=u_top)

    def wmap(b, l):   # per-layer weight block
        return (l, 0, 0)

    def amap(b, l):   # per-batch activation block (resident across layer axis)
        return (b, 0, 0)

    return pl.pallas_call(
        kernel,
        out_shape=jax.ShapeDtypeStruct((B, L, D), jnp.float32),
        grid_spec=pltpu.PrefetchScalarGridSpec(
            num_scalar_prefetch=0,
            grid=(B, num_layers),
            in_specs=[
                pl.BlockSpec((1, L, D), amap),           # x
                pl.BlockSpec((1, D, 3 * D), wmap),       # fused Wq|Wk|Wv (bf16)
                pl.BlockSpec((1, 1, 3 * D), wmap),       # fused bq|bk|bv
                pl.BlockSpec((1, D, dff), wmap),         # W1 (bf16)
                pl.BlockSpec((1, 1, dff), wmap),         # b1
                pl.BlockSpec((1, dff, D), wmap),         # W2 (bf16)
                pl.BlockSpec((1, 5, D), wmap),           # packed b2|g1|be1|g2|be2
            ],
            out_specs=pl.BlockSpec((1, L, D), amap),
        ),
        compiler_params=pltpu.CompilerParams(
            dimension_semantics=("parallel", "arbitrary"),
        ),
    )(x, P["wqkv"], P["bqkv"], P["w1"], P["b1"], P["w2"], P["vecs"])
    # TODO(synk): at long L, additionally tile the query axis so the (L, L)
    # score block stays within VMEM (v7x has 64 MiB); unnecessary at these sizes.


# --------------------------------------------------------------------------- #
# pure-JAX reference (same mixed precision as the kernel) for sanity check
# --------------------------------------------------------------------------- #
def _layer_ref(x, p, n_heads, factor):
    B, L, D = x.shape
    d = D // n_heads
    U = int(factor * math.log(L))
    bf, f32 = jnp.bfloat16, jnp.float32

    qkv = jnp.dot(x.astype(bf), p["wqkv"], preferred_element_type=f32) + p["bqkv"]
    q = qkv[..., 0 * D:1 * D].reshape(B, L, n_heads, d)
    k = qkv[..., 1 * D:2 * D].reshape(B, L, n_heads, d)
    v = qkv[..., 2 * D:3 * D].reshape(B, L, n_heads, d)

    scores = jnp.einsum('blhd,bshd->bhls', q.astype(bf), k.astype(bf),
                        preferred_element_type=f32)
    thr = jax.lax.top_k(scores, U)[0][..., -1:]
    sparse = jnp.where(scores >= thr, scores, 0.0)
    attn = jax.nn.softmax(sparse, axis=-1)
    out = jnp.einsum('bhls,bshd->blhd', attn.astype(bf), v.astype(bf),
                     preferred_element_type=f32).reshape(B, L, D)

    b2, g1, be1, g2, be2 = (p["vecs"][i:i + 1] for i in range(5))
    src = _layer_norm(x + out, g1, be1)
    h1 = jax.nn.gelu(jnp.dot(src.astype(bf), p["w1"], preferred_element_type=f32)
                     + p["b1"], approximate=False)
    h2 = jnp.dot(h1.astype(bf), p["w2"], preferred_element_type=f32) + b2
    return _layer_norm(src + h2, g2, be2)


def _encoder_ref(x, P, n_heads, factor):
    for l in range(P["wqkv"].shape[0]):
        p = {name: arr[l] for name, arr in P.items()}
        x = _layer_ref(x, p, n_heads, factor)
    return x


# --------------------------------------------------------------------------- #
# deterministic parameter init (stacked & packed layout)
# --------------------------------------------------------------------------- #
def init_params(key, d_model, num_layers):
    D, dff, s = d_model, 4 * d_model, 0.1
    wqkv, bqkv, w1, b1, w2, vecs = [], [], [], [], [], []
    for l in range(num_layers):
        ks = jax.random.split(jax.random.fold_in(key, l), 10)
        wq = jax.random.normal(ks[0], (D, D), jnp.float32) * s
        bq = jax.random.normal(ks[1], (1, D), jnp.float32) * s
        wk = jax.random.normal(ks[2], (D, D), jnp.float32) * s
        bk = jax.random.normal(ks[3], (1, D), jnp.float32) * s
        wv = jax.random.normal(ks[4], (D, D), jnp.float32) * s
        bv = jax.random.normal(ks[5], (1, D), jnp.float32) * s
        w1l = jax.random.normal(ks[6], (D, dff), jnp.float32) * s
        b1l = jax.random.normal(ks[7], (1, dff), jnp.float32) * s
        w2l = jax.random.normal(ks[8], (dff, D), jnp.float32) * s
        b2l = jax.random.normal(ks[9], (1, D), jnp.float32) * s
        g1 = jnp.ones((1, D), jnp.float32); be1 = jnp.zeros((1, D), jnp.float32)
        g2 = jnp.ones((1, D), jnp.float32); be2 = jnp.zeros((1, D), jnp.float32)
        wqkv.append(jnp.concatenate([wq, wk, wv], axis=1))
        bqkv.append(jnp.concatenate([bq, bk, bv], axis=1))
        w1.append(w1l); b1.append(b1l); w2.append(w2l)
        vecs.append(jnp.concatenate([b2l, g1, be1, g2, be2], axis=0))
    return {
        "wqkv": jnp.stack(wqkv).astype(jnp.bfloat16),   # (nl, D, 3D)
        "bqkv": jnp.stack(bqkv),                        # (nl, 1, 3D)
        "w1": jnp.stack(w1).astype(jnp.bfloat16),       # (nl, D, 4D)
        "b1": jnp.stack(b1),                            # (nl, 1, 4D)
        "w2": jnp.stack(w2).astype(jnp.bfloat16),       # (nl, 4D, D)
        "vecs": jnp.stack(vecs),                        # (nl, 5, D)
    }


if __name__ == "__main__":
    d_model, n_heads, num_layers, factor = 32, 4, 2, 5
    B, L = 2, 16          # L=16 -> U = int(5*ln(16)) = 13 <= L (valid topk)

    key = jax.random.PRNGKey(0)
    xk, pk = jax.random.split(key)
    x = jax.random.normal(xk, (B, L, d_model), jnp.float32)
    params = init_params(pk, d_model, num_layers)

    out = informer_encoder(x, params, n_heads=n_heads, factor=factor)
    out = jax.block_until_ready(out)

    ref = _encoder_ref(x, params, n_heads, factor)
    assert out.shape == (B, L, d_model)
    assert bool(jnp.all(jnp.isfinite(out)))
    assert bool(jnp.allclose(out, ref, rtol=2e-2, atol=2e-2))

    print("KERNEL_OK")
</pallas_src>

<mosaic_0001>
module attributes {stable_mosaic.version = 11 : i64} {
  func.func @_informer_stack_kernel(%arg0: i32, %arg1: i32, %arg2: memref<1x16x32xf32, #tpu.memory_space<vmem>>, %arg3: memref<1x32x96xbf16, #tpu.memory_space<vmem>>, %arg4: memref<1x1x96xf32, #tpu.memory_space<vmem>>, %arg5: memref<1x32x128xbf16, #tpu.memory_space<vmem>>, %arg6: memref<1x1x128xf32, #tpu.memory_space<vmem>>, %arg7: memref<1x128x32xbf16, #tpu.memory_space<vmem>>, %arg8: memref<1x5x32xf32, #tpu.memory_space<vmem>>, %arg9: memref<1x16x32xf32, #tpu.memory_space<vmem>>) attributes {dimension_semantics = [#tpu.dimension_semantics<parallel>, #tpu.dimension_semantics<arbitrary>], iteration_bounds = array<i64: 2, 2>, scalar_prefetch = 0 : i64, scratch_operands = 0 : i64, tpu.core_type = #tpu.core_type<tc>, window_params = [{transform_indices = @transform_0, window_bounds = array<i64: 1, 16, 32>}, {transform_indices = @transform_1, window_bounds = array<i64: 1, 32, 96>}, {transform_indices = @transform_2, window_bounds = array<i64: 1, 1, 96>}, {transform_indices = @transform_3, window_bounds = array<i64: 1, 32, 128>}, {transform_indices = @transform_4, window_bounds = array<i64: 1, 1, 128>}, {transform_indices = @transform_5, window_bounds = array<i64: 1, 128, 32>}, {transform_indices = @transform_6, window_bounds = array<i64: 1, 5, 32>}, {transform_indices = @transform_7, window_bounds = array<i64: 1, 16, 32>}]} {
    %c0_i32 = arith.constant 0 : i32
    %0 = arith.cmpi eq, %arg1, %c0_i32 : i32
    %1 = arith.extui %0 : i1 to i32
    %c0_i32_0 = arith.constant 0 : i32
    %2 = arith.cmpi ne, %1, %c0_i32_0 : i32
    scf.if %2 {
      %c0_98 = arith.constant 0 : index
      %c0_99 = arith.constant 0 : index
      %c0_100 = arith.constant 0 : index
      %257 = vector.load %arg2[%c0_98, %c0_99, %c0_100] : memref<1x16x32xf32, #tpu.memory_space<vmem>>, vector<1x16x32xf32>
      %c0_101 = arith.constant 0 : index
      %c0_102 = arith.constant 0 : index
      %c0_103 = arith.constant 0 : index
      %258 = vector.load %arg9[%c0_101, %c0_102, %c0_103] : memref<1x16x32xf32, #tpu.memory_space<vmem>>, vector<1x16x32xf32>
      tpu.vector_store %arg9[%c0_101, %c0_102, %c0_103], %257 {strides = array<i32>} : memref<1x16x32xf32, #tpu.memory_space<vmem>>, vector<1x16x32xf32>,
    } else {
    }
    %c0 = arith.constant 0 : index
    %c0_1 = arith.constant 0 : index
    %c0_2 = arith.constant 0 : index
    %3 = vector.load %arg9[%c0, %c0_1, %c0_2] : memref<1x16x32xf32, #tpu.memory_space<vmem>>, vector<1x16x32xf32>
    %4 = vector.shape_cast %3 : vector<1x16x32xf32> to vector<16x32xf32>
    %5 = arith.truncf %4 : vector<16x32xf32> to vector<16x32xbf16>
    %c0_3 = arith.constant 0 : index
    %c0_4 = arith.constant 0 : index
    %c0_5 = arith.constant 0 : index
    %6 = vector.load %arg3[%c0_3, %c0_4, %c0_5] : memref<1x32x96xbf16, #tpu.memory_space<vmem>>, vector<1x32x96xbf16>
    %7 = vector.shape_cast %6 : vector<1x32x96xbf16> to vector<32x96xbf16>
    %cst = arith.constant dense<0.000000e+00> : vector<16x96xf32>
    %8 = tpu.matmul %5, %7, %cst {dimension_numbers = #tpu.dot_dimension_numbers<[1], [0], [0], [1], [0, 0, 1, 1], [], []>} : vector<16x32xbf16>, vector<32x96xbf16>, vector<16x96xf32> -> vector<16x96xf32>
    %c0_6 = arith.constant 0 : index
    %c0_7 = arith.constant 0 : index
    %c0_8 = arith.constant 0 : index
    %9 = vector.load %arg4[%c0_6, %c0_7, %c0_8] : memref<1x1x96xf32, #tpu.memory_space<vmem>>, vector<1x1x96xf32>
    %10 = vector.shape_cast %9 : vector<1x1x96xf32> to vector<1x96xf32>
    %11 = vector.broadcast %10 : vector<1x96xf32> to vector<16x96xf32>
    %12 = arith.addf %8, %11 : vector<16x96xf32>
    %13 = vector.extract_strided_slice %12 {offsets = [0, 0], sizes = [16, 32], strides = [1, 1]} : vector<16x96xf32> to vector<16x32xf32>
    %14 = vector.extract_strided_slice %12 {offsets = [0, 32], sizes = [16, 32], strides = [1, 1]} : vector<16x96xf32> to vector<16x32xf32>
    %15 = vector.extract_strided_slice %12 {offsets = [0, 64], sizes = [16, 32], strides = [1, 1]} : vector<16x96xf32> to vector<16x32xf32>
    %16 = arith.truncf %14 : vector<16x32xf32> to vector<16x32xbf16>
    %17 = tpu.iota {dimensions = array<i32: 1>} : vector<16x32xi32>
    %cst_9 = arith.constant 0.000000e+00 : f32
    %18 = vector.broadcast %cst_9 : f32 to vector<16x32xf32>
    %c0_i32_10 = arith.constant 0 : i32
    %19 = vector.broadcast %c0_i32_10 : i32 to vector<16x32xi32>
    %20 = arith.cmpi sge, %17, %19 : vector<16x32xi32>
    %c8_i32 = arith.constant 8 : i32
    %21 = vector.broadcast %c8_i32 : i32 to vector<16x32xi32>
    %22 = arith.cmpi slt, %17, %21 : vector<16x32xi32>
    %23 = arith.andi %20, %22 : vector<16x32xi1>
    %cst_11 = arith.constant 0.000000e+00 : f32
    %24 = vector.broadcast %cst_11 : f32 to vector<16x32xf32>
    %25 = arith.select %23, %13, %24 : vector<16x32xi1>, vector<16x32xf32>
    %26 = arith.truncf %25 : vector<16x32xf32> to vector<16x32xbf16>
    %cst_12 = arith.constant dense<0.000000e+00> : vector<16x16xf32>
    %27 = tpu.matmul %26, %16, %cst_12 {dimension_numbers = #tpu.dot_dimension_numbers<[1], [1], [0], [0], [0, 0, 1, 0], [], []>} : vector<16x32xbf16>, vector<16x32xbf16>, vector<16x16xf32> -> vector<16x16xf32>
    %cst_13 = arith.constant 0.000000e+00 : f32
    %28 = vector.broadcast %cst_13 : f32 to vector<16x1xf32>
    %c0_i32_14 = arith.constant 0 : i32
    %c13_i32 = arith.constant 13 : i32
    %29 = arith.addi %c0_i32_14, %c13_i32 : i32
    %c1_i32 = arith.constant 1 : i32
    %30:2 = scf.for %arg10 = %c0_i32_14 to %29 step %c1_i32 iter_args(%arg11 = %27, %arg12 = %28) -> (vector<16x16xf32>, vector<16x1xf32>)  : i32 {
      %cst_98 = arith.constant dense<0xFF800000> : vector<16xf32>
      %257 = vector.multi_reduction <maximumf>, %arg11, %cst_98 [1] : vector<16x16xf32> to vector<16xf32>
      %258 = vector.shape_cast %257 : vector<16xf32> to vector<16x1xf32>
      %259 = vector.broadcast %258 : vector<16x1xf32> to vector<16x16xf32>
      %260 = arith.cmpf oge, %arg11, %259 : vector<16x16xf32>
      %cst_99 = arith.constant 0xFF800000 : f32
      %261 = vector.broadcast %cst_99 : f32 to vector<16x16xf32>
      %262 = arith.select %260, %261, %arg11 : vector<16x16xi1>, vector<16x16xf32>
      scf.yield %262, %258 : vector<16x16xf32>, vector<16x1xf32>
    }
    %31 = vector.broadcast %30#1 : vector<16x1xf32> to vector<16x16xf32>
    %32 = arith.cmpf oge, %27, %31 : vector<16x16xf32>
    %cst_15 = arith.constant 0.000000e+00 : f32
    %33 = vector.broadcast %cst_15 : f32 to vector<16x16xf32>
    %34 = arith.select %32, %27, %33 : vector<16x16xi1>, vector<16x16xf32>
    %cst_16 = arith.constant dense<0xFF800000> : vector<16xf32>
    %35 = vector.multi_reduction <maximumf>, %34, %cst_16 [1] : vector<16x16xf32> to vector<16xf32>
    %36 = vector.shape_cast %35 : vector<16xf32> to vector<16x1xf32>
    %37 = vector.broadcast %36 : vector<16x1xf32> to vector<16x16xf32>
    %38 = arith.subf %34, %37 : vector<16x16xf32>
    %39 = math.exp %38 : vector<16x16xf32>
    %cst_17 = arith.constant dense<0.000000e+00> : vector<16xf32>
    %40 = vector.multi_reduction <add>, %39, %cst_17 [1] : vector<16x16xf32> to vector<16xf32>
    %41 = vector.shape_cast %40 : vector<16xf32> to vector<16x1xf32>
    %42 = tpu.reciprocal %41 : vector<16x1xf32> -> vector<16x1xf32>
    %43 = vector.broadcast %42 : vector<16x1xf32> to vector<16x16xf32>
    %44 = arith.mulf %39, %43 : vector<16x16xf32>
    %cst_18 = arith.constant 0.000000e+00 : f32
    %45 = vector.broadcast %cst_18 : f32 to vector<16x32xf32>
    %46 = arith.select %23, %15, %45 : vector<16x32xi1>, vector<16x32xf32>
    %47 = arith.truncf %46 : vector<16x32xf32> to vector<16x32xbf16>
    %48 = arith.truncf %44 : vector<16x16xf32> to vector<16x16xbf16>
    %cst_19 = arith.constant dense<0.000000e+00> : vector<16x32xf32>
    %49 = tpu.matmul %48, %47, %cst_19 {dimension_numbers = #tpu.dot_dimension_numbers<[1], [0], [0], [1], [0, 0, 1, 1], [], []>} : vector<16x16xbf16>, vector<16x32xbf16>, vector<16x32xf32> -> vector<16x32xf32>
    %50 = arith.addf %18, %49 : vector<16x32xf32>
    %c8_i32_20 = arith.constant 8 : i32
    %51 = vector.broadcast %c8_i32_20 : i32 to vector<16x32xi32>
    %52 = arith.cmpi sge, %17, %51 : vector<16x32xi32>
    %c16_i32 = arith.constant 16 : i32
    %53 = vector.broadcast %c16_i32 : i32 to vector<16x32xi32>
    %54 = arith.cmpi slt, %17, %53 : vector<16x32xi32>
    %55 = arith.andi %52, %54 : vector<16x32xi1>
    %cst_21 = arith.constant 0.000000e+00 : f32
    %56 = vector.broadcast %cst_21 : f32 to vector<16x32xf32>
    %57 = arith.select %55, %13, %56 : vector<16x32xi1>, vector<16x32xf32>
    %58 = arith.truncf %57 : vector<16x32xf32> to vector<16x32xbf16>
    %cst_22 = arith.constant dense<0.000000e+00> : vector<16x16xf32>
    %59 = tpu.matmul %58, %16, %cst_22 {dimension_numbers = #tpu.dot_dimension_numbers<[1], [1], [0], [0], [0, 0, 1, 0], [], []>} : vector<16x32xbf16>, vector<16x32xbf16>, vector<16x16xf32> -> vector<16x16xf32>
    %cst_23 = arith.constant 0.000000e+00 : f32
    %60 = vector.broadcast %cst_23 : f32 to vector<16x1xf32>
    %c0_i32_24 = arith.constant 0 : i32
    %c13_i32_25 = arith.constant 13 : i32
    %61 = arith.addi %c0_i32_24, %c13_i32_25 : i32
    %c1_i32_26 = arith.constant 1 : i32
    %62:2 = scf.for %arg10 = %c0_i32_24 to %61 step %c1_i32_26 iter_args(%arg11 = %59, %arg12 = %60) -> (vector<16x16xf32>, vector<16x1xf32>)  : i32 {
      %cst_98 = arith.constant dense<0xFF800000> : vector<16xf32>
      %257 = vector.multi_reduction <maximumf>, %arg11, %cst_98 [1] : vector<16x16xf32> to vector<16xf32>
      %258 = vector.shape_cast %257 : vector<16xf32> to vector<16x1xf32>
      %259 = vector.broadcast %258 : vector<16x1xf32> to vector<16x16xf32>
      %260 = arith.cmpf oge, %arg11, %259 : vector<16x16xf32>
      %cst_99 = arith.constant 0xFF800000 : f32
      %261 = vector.broadcast %cst_99 : f32 to vector<16x16xf32>
      %262 = arith.select %260, %261, %arg11 : vector<16x16xi1>, vector<16x16xf32>
      scf.yield %262, %258 : vector<16x16xf32>, vector<16x1xf32>
    }
    %63 = vector.broadcast %62#1 : vector<16x1xf32> to vector<16x16xf32>
    %64 = arith.cmpf oge, %59, %63 : vector<16x16xf32>
    %cst_27 = arith.constant 0.000000e+00 : f32
    %65 = vector.broadcast %cst_27 : f32 to vector<16x16xf32>
    %66 = arith.select %64, %59, %65 : vector<16x16xi1>, vector<16x16xf32>
    %cst_28 = arith.constant dense<0xFF800000> : vector<16xf32>
    %67 = vector.multi_reduction <maximumf>, %66, %cst_28 [1] : vector<16x16xf32> to vector<16xf32>
    %68 = vector.shape_cast %67 : vector<16xf32> to vector<16x1xf32>
    %69 = vector.broadcast %68 : vector<16x1xf32> to vector<16x16xf32>
    %70 = arith.subf %66, %69 : vector<16x16xf32>
    %71 = math.exp %70 : vector<16x16xf32>
    %cst_29 = arith.constant dense<0.000000e+00> : vector<16xf32>
    %72 = vector.multi_reduction <add>, %71, %cst_29 [1] : vector<16x16xf32> to vector<16xf32>
    %73 = vector.shape_cast %72 : vector<16xf32> to vector<16x1xf32>
    %74 = tpu.reciprocal %73 : vector<16x1xf32> -> vector<16x1xf32>
    %75 = vector.broadcast %74 : vector<16x1xf32> to vector<16x16xf32>
    %76 = arith.mulf %71, %75 : vector<16x16xf32>
    %cst_30 = arith.constant 0.000000e+00 : f32
    %77 = vector.broadcast %cst_30 : f32 to vector<16x32xf32>
    %78 = arith.select %55, %15, %77 : vector<16x32xi1>, vector<16x32xf32>
    %79 = arith.truncf %78 : vector<16x32xf32> to vector<16x32xbf16>
    %80 = arith.truncf %76 : vector<16x16xf32> to vector<16x16xbf16>
    %cst_31 = arith.constant dense<0.000000e+00> : vector<16x32xf32>
    %81 = tpu.matmul %80, %79, %cst_31 {dimension_numbers = #tpu.dot_dimension_numbers<[1], [0], [0], [1], [0, 0, 1, 1], [], []>} : vector<16x16xbf16>, vector<16x32xbf16>, vector<16x32xf32> -> vector<16x32xf32>
    %82 = arith.addf %50, %81 : vector<16x32xf32>
    %c16_i32_32 = arith.constant 16 : i32
    %83 = vector.broadcast %c16_i32_32 : i32 to vector<16x32xi32>
    %84 = arith.cmpi sge, %17, %83 : vector<16x32xi32>
    %c24_i32 = arith.constant 24 : i32
    %85 = vector.broadcast %c24_i32 : i32 to vector<16x32xi32>
    %86 = arith.cmpi slt, %17, %85 : vector<16x32xi32>
    %87 = arith.andi %84, %86 : vector<16x32xi1>
    %cst_33 = arith.constant 0.000000e+00 : f32
    %88 = vector.broadcast %cst_33 : f32 to vector<16x32xf32>
    %89 = arith.select %87, %13, %88 : vector<16x32xi1>, vector<16x32xf32>
    %90 = arith.truncf %89 : vector<16x32xf32> to vector<16x32xbf16>
    %cst_34 = arith.constant dense<0.000000e+00> : vector<16x16xf32>
    %91 = tpu.matmul %90, %16, %cst_34 {dimension_numbers = #tpu.dot_dimension_numbers<[1], [1], [0], [0], [0, 0, 1, 0], [], []>} : vector<16x32xbf16>, vector<16x32xbf16>, vector<16x16xf32> -> vector<16x16xf32>
    %cst_35 = arith.constant 0.000000e+00 : f32
    %92 = vector.broadcast %cst_35 : f32 to vector<16x1xf32>
    %c0_i32_36 = arith.constant 0 : i32
    %c13_i32_37 = arith.constant 13 : i32
    %93 = arith.addi %c0_i32_36, %c13_i32_37 : i32
    %c1_i32_38 = arith.constant 1 : i32
    %94:2 = scf.for %arg10 = %c0_i32_36 to %93 step %c1_i32_38 iter_args(%arg11 = %91, %arg12 = %92) -> (vector<16x16xf32>, vector<16x1xf32>)  : i32 {
      %cst_98 = arith.constant dense<0xFF800000> : vector<16xf32>
      %257 = vector.multi_reduction <maximumf>, %arg11, %cst_98 [1] : vector<16x16xf32> to vector<16xf32>
      %258 = vector.shape_cast %257 : vector<16xf32> to vector<16x1xf32>
      %259 = vector.broadcast %258 : vector<16x1xf32> to vector<16x16xf32>
      %260 = arith.cmpf oge, %arg11, %259 : vector<16x16xf32>
      %cst_99 = arith.constant 0xFF800000 : f32
      %261 = vector.broadcast %cst_99 : f32 to vector<16x16xf32>
      %262 = arith.select %260, %261, %arg11 : vector<16x16xi1>, vector<16x16xf32>
      scf.yield %262, %258 : vector<16x16xf32>, vector<16x1xf32>
    }
    %95 = vector.broadcast %94#1 : vector<16x1xf32> to vector<16x16xf32>
    %96 = arith.cmpf oge, %91, %95 : vector<16x16xf32>
    %cst_39 = arith.constant 0.000000e+00 : f32
    %97 = vector.broadcast %cst_39 : f32 to vector<16x16xf32>
    %98 = arith.select %96, %91, %97 : vector<16x16xi1>, vector<16x16xf32>
    %cst_40 = arith.constant dense<0xFF800000> : vector<16xf32>
    %99 = vector.multi_reduction <maximumf>, %98, %cst_40 [1] : vector<16x16xf32> to vector<16xf32>
    %100 = vector.shape_cast %99 : vector<16xf32> to vector<16x1xf32>
    %101 = vector.broadcast %100 : vector<16x1xf32> to vector<16x16xf32>
    %102 = arith.subf %98, %101 : vector<16x16xf32>
    %103 = math.exp %102 : vector<16x16xf32>
    %cst_41 = arith.constant dense<0.000000e+00> : vector<16xf32>
    %104 = vector.multi_reduction <add>, %103, %cst_41 [1] : vector<16x16xf32> to vector<16xf32>
    %105 = vector.shape_cast %104 : vector<16xf32> to vector<16x1xf32>
    %106 = tpu.reciprocal %105 : vector<16x1xf32> -> vector<16x1xf32>
    %107 = vector.broadcast %106 : vector<16x1xf32> to vector<16x16xf32>
    %108 = arith.mulf %103, %107 : vector<16x16xf32>
    %cst_42 = arith.constant 0.000000e+00 : f32
    %109 = vector.broadcast %cst_42 : f32 to vector<16x32xf32>
    %110 = arith.select %87, %15, %109 : vector<16x32xi1>, vector<16x32xf32>
    %111 = arith.truncf %110 : vector<16x32xf32> to vector<16x32xbf16>
    %112 = arith.truncf %108 : vector<16x16xf32> to vector<16x16xbf16>
    %cst_43 = arith.constant dense<0.000000e+00> : vector<16x32xf32>
    %113 = tpu.matmul %112, %111, %cst_43 {dimension_numbers = #tpu.dot_dimension_numbers<[1], [0], [0], [1], [0, 0, 1, 1], [], []>} : vector<16x16xbf16>, vector<16x32xbf16>, vector<16x32xf32> -> vector<16x32xf32>
    %114 = arith.addf %82, %113 : vector<16x32xf32>
    %c24_i32_44 = arith.constant 24 : i32
    %115 = vector.broadcast %c24_i32_44 : i32 to vector<16x32xi32>
    %116 = arith.cmpi sge, %17, %115 : vector<16x32xi32>
    %c32_i32 = arith.constant 32 : i32
    %117 = vector.broadcast %c32_i32 : i32 to vector<16x32xi32>
    %118 = arith.cmpi slt, %17, %117 : vector<16x32xi32>
    %119 = arith.andi %116, %118 : vector<16x32xi1>
    %cst_45 = arith.constant 0.000000e+00 : f32
    %120 = vector.broadcast %cst_45 : f32 to vector<16x32xf32>
    %121 = arith.select %119, %13, %120 : vector<16x32xi1>, vector<16x32xf32>
    %122 = arith.truncf %121 : vector<16x32xf32> to vector<16x32xbf16>
    %cst_46 = arith.constant dense<0.000000e+00> : vector<16x16xf32>
    %123 = tpu.matmul %122, %16, %cst_46 {dimension_numbers = #tpu.dot_dimension_numbers<[1], [1], [0], [0], [0, 0, 1, 0], [], []>} : vector<16x32xbf16>, vector<16x32xbf16>, vector<16x16xf32> -> vector<16x16xf32>
    %cst_47 = arith.constant 0.000000e+00 : f32
    %124 = vector.broadcast %cst_47 : f32 to vector<16x1xf32>
    %c0_i32_48 = arith.constant 0 : i32
    %c13_i32_49 = arith.constant 13 : i32
    %125 = arith.addi %c0_i32_48, %c13_i32_49 : i32
    %c1_i32_50 = arith.constant 1 : i32
    %126:2 = scf.for %arg10 = %c0_i32_48 to %125 step %c1_i32_50 iter_args(%arg11 = %123, %arg12 = %124) -> (vector<16x16xf32>, vector<16x1xf32>)  : i32 {
      %cst_98 = arith.constant dense<0xFF800000> : vector<16xf32>
      %257 = vector.multi_reduction <maximumf>, %arg11, %cst_98 [1] : vector<16x16xf32> to vector<16xf32>
      %258 = vector.shape_cast %257 : vector<16xf32> to vector<16x1xf32>
      %259 = vector.broadcast %258 : vector<16x1xf32> to vector<16x16xf32>
      %260 = arith.cmpf oge, %arg11, %259 : vector<16x16xf32>
      %cst_99 = arith.constant 0xFF800000 : f32
      %261 = vector.broadcast %cst_99 : f32 to vector<16x16xf32>
      %262 = arith.select %260, %261, %arg11 : vector<16x16xi1>, vector<16x16xf32>
      scf.yield %262, %258 : vector<16x16xf32>, vector<16x1xf32>
    }
    %127 = vector.broadcast %126#1 : vector<16x1xf32> to vector<16x16xf32>
    %128 = arith.cmpf oge, %123, %127 : vector<16x16xf32>
    %cst_51 = arith.constant 0.000000e+00 : f32
    %129 = vector.broadcast %cst_51 : f32 to vector<16x16xf32>
    %130 = arith.select %128, %123, %129 : vector<16x16xi1>, vector<16x16xf32>
    %cst_52 = arith.constant dense<0xFF800000> : vector<16xf32>
    %131 = vector.multi_reduction <maximumf>, %130, %cst_52 [1] : vector<16x16xf32> to vector<16xf32>
    %132 = vector.shape_cast %131 : vector<16xf32> to vector<16x1xf32>
    %133 = vector.broadcast %132 : vector<16x1xf32> to vector<16x16xf32>
    %134 = arith.subf %130, %133 : vector<16x16xf32>
    %135 = math.exp %134 : vector<16x16xf32>
    %cst_53 = arith.constant dense<0.000000e+00> : vector<16xf32>
    %136 = vector.multi_reduction <add>, %135, %cst_53 [1] : vector<16x16xf32> to vector<16xf32>
    %137 = vector.shape_cast %136 : vector<16xf32> to vector<16x1xf32>
    %138 = tpu.reciprocal %137 : vector<16x1xf32> -> vector<16x1xf32>
    %139 = vector.broadcast %138 : vector<16x1xf32> to vector<16x16xf32>
    %140 = arith.mulf %135, %139 : vector<16x16xf32>
    %cst_54 = arith.constant 0.000000e+00 : f32
    %141 = vector.broadcast %cst_54 : f32 to vector<16x32xf32>
    %142 = arith.select %119, %15, %141 : vector<16x32xi1>, vector<16x32xf32>
    %143 = arith.truncf %142 : vector<16x32xf32> to vector<16x32xbf16>
    %144 = arith.truncf %140 : vector<16x16xf32> to vector<16x16xbf16>
    %cst_55 = arith.constant dense<0.000000e+00> : vector<16x32xf32>
    %145 = tpu.matmul %144, %143, %cst_55 {dimension_numbers = #tpu.dot_dimension_numbers<[1], [0], [0], [1], [0, 0, 1, 1], [], []>} : vector<16x16xbf16>, vector<16x32xbf16>, vector<16x32xf32> -> vector<16x32xf32>
    %146 = arith.addf %114, %145 : vector<16x32xf32>
    %c0_56 = arith.constant 0 : index
    %c0_57 = arith.constant 0 : index
    %c0_58 = arith.constant 0 : index
    %147 = vector.load %arg8[%c0_56, %c0_57, %c0_58] : memref<1x5x32xf32, #tpu.memory_space<vmem>>, vector<1x5x32xf32>
    %148 = vector.shape_cast %147 : vector<1x5x32xf32> to vector<5x32xf32>
    %149 = vector.extract_strided_slice %148 {offsets = [0, 0], sizes = [1, 32], strides = [1, 1]} : vector<5x32xf32> to vector<1x32xf32>
    %150 = vector.extract_strided_slice %148 {offsets = [1, 0], sizes = [1, 32], strides = [1, 1]} : vector<5x32xf32> to vector<1x32xf32>
    %151 = vector.extract_strided_slice %148 {offsets = [2, 0], sizes = [1, 32], strides = [1, 1]} : vector<5x32xf32> to vector<1x32xf32>
    %152 = vector.extract_strided_slice %148 {offsets = [3, 0], sizes = [1, 32], strides = [1, 1]} : vector<5x32xf32> to vector<1x32xf32>
    %153 = vector.extract_strided_slice %148 {offsets = [4, 0], sizes = [1, 32], strides = [1, 1]} : vector<5x32xf32> to vector<1x32xf32>
    %154 = arith.addf %4, %146 : vector<16x32xf32>
    %cst_59 = arith.constant dense<0.000000e+00> : vector<16xf32>
    %155 = vector.multi_reduction <add>, %154, %cst_59 [1] : vector<16x32xf32> to vector<16xf32>
    %156 = vector.shape_cast %155 : vector<16xf32> to vector<16x1xf32>
    %cst_60 = arith.constant 3.200000e+01 : f32
    %157 = vector.broadcast %cst_60 : f32 to vector<16x1xf32>
    %158 = arith.divf %156, %157 : vector<16x1xf32>
    %159 = vector.broadcast %158 : vector<16x1xf32> to vector<16x32xf32>
    %160 = arith.subf %154, %159 : vector<16x32xf32>
    %161 = arith.mulf %160, %160 : vector<16x32xf32>
    %cst_61 = arith.constant dense<0.000000e+00> : vector<16xf32>
    %162 = vector.multi_reduction <add>, %161, %cst_61 [1] : vector<16x32xf32> to vector<16xf32>
    %163 = vector.shape_cast %162 : vector<16xf32> to vector<16x1xf32>
    %cst_62 = arith.constant 3.200000e+01 : f32
    %164 = vector.broadcast %cst_62 : f32 to vector<16x1xf32>
    %165 = arith.divf %163, %164 : vector<16x1xf32>
    %166 = vector.broadcast %158 : vector<16x1xf32> to vector<16x32xf32>
    %167 = arith.subf %154, %166 : vector<16x32xf32>
    %cst_63 = arith.constant 9.99999974E-6 : f32
    %168 = vector.broadcast %cst_63 : f32 to vector<16x1xf32>
    %169 = arith.addf %165, %168 : vector<16x1xf32>
    %170 = math.rsqrt %169 : vector<16x1xf32>
    %171 = vector.broadcast %170 : vector<16x1xf32> to vector<16x32xf32>
    %172 = arith.mulf %167, %171 : vector<16x32xf32>
    %173 = vector.broadcast %150 : vector<1x32xf32> to vector<16x32xf32>
    %174 = arith.mulf %172, %173 : vector<16x32xf32>
    %175 = vector.broadcast %151 : vector<1x32xf32> to vector<16x32xf32>
    %176 = arith.addf %174, %175 : vector<16x32xf32>
    %177 = arith.truncf %176 : vector<16x32xf32> to vector<16x32xbf16>
    %c0_64 = arith.constant 0 : index
    %c0_65 = arith.constant 0 : index
    %c0_66 = arith.constant 0 : index
    %178 = vector.load %arg5[%c0_64, %c0_65, %c0_66] : memref<1x32x128xbf16, #tpu.memory_space<vmem>>, vector<1x32x128xbf16>
    %179 = vector.shape_cast %178 : vector<1x32x128xbf16> to vector<32x128xbf16>
    %cst_67 = arith.constant dense<0.000000e+00> : vector<16x128xf32>
    %180 = tpu.matmul %177, %179, %cst_67 {dimension_numbers = #tpu.dot_dimension_numbers<[1], [0], [0], [1], [0, 0, 1, 1], [], []>} : vector<16x32xbf16>, vector<32x128xbf16>, vector<16x128xf32> -> vector<16x128xf32>
    %c0_68 = arith.constant 0 : index
    %c0_69 = arith.constant 0 : index
    %c0_70 = arith.constant 0 : index
    %181 = vector.load %arg6[%c0_68, %c0_69, %c0_70] : memref<1x1x128xf32, #tpu.memory_space<vmem>>, vector<1x1x128xf32>
    %182 = vector.shape_cast %181 : vector<1x1x128xf32> to vector<1x128xf32>
    %183 = vector.broadcast %182 : vector<1x128xf32> to vector<16x128xf32>
    %184 = arith.addf %180, %183 : vector<16x128xf32>
    %cst_71 = arith.constant 5.000000e-01 : f32
    %185 = vector.broadcast %cst_71 : f32 to vector<16x128xf32>
    %186 = arith.mulf %185, %184 : vector<16x128xf32>
    %cst_72 = arith.constant 0.707106769 : f32
    %187 = vector.broadcast %cst_72 : f32 to vector<16x128xf32>
    %188 = arith.mulf %184, %187 : vector<16x128xf32>
    %189 = math.absf %188 : vector<16x128xf32>
    %cst_73 = arith.constant 0.327591091 : f32
    %190 = vector.broadcast %cst_73 : f32 to vector<16x128xf32>
    %191 = arith.mulf %190, %189 : vector<16x128xf32>
    %cst_74 = arith.constant 1.000000e+00 : f32
    %192 = vector.broadcast %cst_74 : f32 to vector<16x128xf32>
    %193 = arith.addf %192, %191 : vector<16x128xf32>
    %cst_75 = arith.constant 1.000000e+00 : f32
    %194 = vector.broadcast %cst_75 : f32 to vector<16x128xf32>
    %195 = arith.divf %194, %193 : vector<16x128xf32>
    %cst_76 = arith.constant 1.06140542 : f32
    %196 = vector.broadcast %cst_76 : f32 to vector<16x128xf32>
    %197 = arith.mulf %196, %195 : vector<16x128xf32>
    %cst_77 = arith.constant -1.45315206 : f32
    %198 = vector.broadcast %cst_77 : f32 to vector<16x128xf32>
    %199 = arith.addf %197, %198 : vector<16x128xf32>
    %200 = arith.mulf %199, %195 : vector<16x128xf32>
    %cst_78 = arith.constant 1.42141378 : f32
    %201 = vector.broadcast %cst_78 : f32 to vector<16x128xf32>
    %202 = arith.addf %200, %201 : vector<16x128xf32>
    %203 = arith.mulf %202, %195 : vector<16x128xf32>
    %cst_79 = arith.constant -0.284496725 : f32
    %204 = vector.broadcast %cst_79 : f32 to vector<16x128xf32>
    %205 = arith.addf %203, %204 : vector<16x128xf32>
    %206 = arith.mulf %205, %195 : vector<16x128xf32>
    %cst_80 = arith.constant 0.254829586 : f32
    %207 = vector.broadcast %cst_80 : f32 to vector<16x128xf32>
    %208 = arith.addf %206, %207 : vector<16x128xf32>
    %209 = arith.mulf %208, %195 : vector<16x128xf32>
    %cst_81 = arith.constant 0.000000e+00 : f32
    %210 = vector.broadcast %cst_81 : f32 to vector<16x128xf32>
    %211 = arith.subf %210, %189 : vector<16x128xf32>
    %212 = arith.mulf %211, %189 : vector<16x128xf32>
    %213 = math.exp %212 : vector<16x128xf32>
    %214 = arith.mulf %209, %213 : vector<16x128xf32>
    %cst_82 = arith.constant 1.000000e+00 : f32
    %215 = vector.broadcast %cst_82 : f32 to vector<16x128xf32>
    %216 = arith.subf %215, %214 : vector<16x128xf32>
    %cst_83 = arith.constant 0.000000e+00 : f32
    %217 = vector.broadcast %cst_83 : f32 to vector<16x128xf32>
    %218 = arith.cmpf oge, %188, %217 : vector<16x128xf32>
    %cst_84 = arith.constant 0.000000e+00 : f32
    %219 = vector.broadcast %cst_84 : f32 to vector<16x128xf32>
    %220 = arith.subf %219, %216 : vector<16x128xf32>
    %221 = arith.select %218, %216, %220 : vector<16x128xi1>, vector<16x128xf32>
    %cst_85 = arith.constant 1.000000e+00 : f32
    %222 = vector.broadcast %cst_85 : f32 to vector<16x128xf32>
    %223 = arith.addf %222, %221 : vector<16x128xf32>
    %224 = arith.mulf %186, %223 : vector<16x128xf32>
    %225 = arith.truncf %224 : vector<16x128xf32> to vector<16x128xbf16>
    %c0_86 = arith.constant 0 : index
    %c0_87 = arith.constant 0 : index
    %c0_88 = arith.constant 0 : index
    %226 = vector.load %arg7[%c0_86, %c0_87, %c0_88] : memref<1x128x32xbf16, #tpu.memory_space<vmem>>, vector<1x128x32xbf16>
    %227 = vector.shape_cast %226 : vector<1x128x32xbf16> to vector<128x32xbf16>
    %cst_89 = arith.constant dense<0.000000e+00> : vector<16x32xf32>
    %228 = tpu.matmul %225, %227, %cst_89 {dimension_numbers = #tpu.dot_dimension_numbers<[1], [0], [0], [1], [0, 0, 1, 1], [], []>} : vector<16x128xbf16>, vector<128x32xbf16>, vector<16x32xf32> -> vector<16x32xf32>
    %229 = vector.broadcast %149 : vector<1x32xf32> to vector<16x32xf32>
    %230 = arith.addf %228, %229 : vector<16x32xf32>
    %231 = arith.addf %176, %230 : vector<16x32xf32>
    %cst_90 = arith.constant dense<0.000000e+00> : vector<16xf32>
    %232 = vector.multi_reduction <add>, %231, %cst_90 [1] : vector<16x32xf32> to vector<16xf32>
    %233 = vector.shape_cast %232 : vector<16xf32> to vector<16x1xf32>
    %cst_91 = arith.constant 3.200000e+01 : f32
    %234 = vector.broadcast %cst_91 : f32 to vector<16x1xf32>
    %235 = arith.divf %233, %234 : vector<16x1xf32>
    %236 = vector.broadcast %235 : vector<16x1xf32> to vector<16x32xf32>
    %237 = arith.subf %231, %236 : vector<16x32xf32>
    %238 = arith.mulf %237, %237 : vector<16x32xf32>
    %cst_92 = arith.constant dense<0.000000e+00> : vector<16xf32>
    %239 = vector.multi_reduction <add>, %238, %cst_92 [1] : vector<16x32xf32> to vector<16xf32>
    %240 = vector.shape_cast %239 : vector<16xf32> to vector<16x1xf32>
    %cst_93 = arith.constant 3.200000e+01 : f32
    %241 = vector.broadcast %cst_93 : f32 to vector<16x1xf32>
    %242 = arith.divf %240, %241 : vector<16x1xf32>
    %243 = vector.broadcast %235 : vector<16x1xf32> to vector<16x32xf32>
    %244 = arith.subf %231, %243 : vector<16x32xf32>
    %cst_94 = arith.constant 9.99999974E-6 : f32
    %245 = vector.broadcast %cst_94 : f32 to vector<16x1xf32>
    %246 = arith.addf %242, %245 : vector<16x1xf32>
    %247 = math.rsqrt %246 : vector<16x1xf32>
    %248 = vector.broadcast %247 : vector<16x1xf32> to vector<16x32xf32>
    %249 = arith.mulf %244, %248 : vector<16x32xf32>
    %250 = vector.broadcast %152 : vector<1x32xf32> to vector<16x32xf32>
    %251 = arith.mulf %249, %250 : vector<16x32xf32>
    %252 = vector.broadcast %153 : vector<1x32xf32> to vector<16x32xf32>
    %253 = arith.addf %251, %252 : vector<16x32xf32>
    %c0_95 = arith.constant 0 : index
    %c0_96 = arith.constant 0 : index
    %c0_97 = arith.constant 0 : index
    %254 = vector.load %arg9[%c0_95, %c0_96, %c0_97] : memref<1x16x32xf32, #tpu.memory_space<vmem>>, vector<1x16x32xf32>
    %255 = vector.shape_cast %254 : vector<1x16x32xf32> to vector<16x32xf32>
    %256 = vector.shape_cast %253 : vector<16x32xf32> to vector<1x16x32xf32>
    tpu.vector_store %arg9[%c0_95, %c0_96, %c0_97], %256 {strides = array<i32>} : memref<1x16x32xf32, #tpu.memory_space<vmem>>, vector<1x16x32xf32>,
    return
  }
  func.func @transform_0(%arg0: i32, %arg1: i32) -> (i32, i32, i32) {
    %c0_i32 = arith.constant 0 : i32
    %c0_i32_0 = arith.constant 0 : i32
    %c0_i32_1 = arith.constant 0 : i32
    return %arg0, %c0_i32, %c0_i32_0 : i32, i32, i32
  }
  func.func @transform_1(%arg0: i32, %arg1: i32) -> (i32, i32, i32) {
    %c0_i32 = arith.constant 0 : i32
    %c0_i32_0 = arith.constant 0 : i32
    %c0_i32_1 = arith.constant 0 : i32
    return %arg1, %c0_i32, %c0_i32_0 : i32, i32, i32
  }
  func.func @transform_2(%arg0: i32, %arg1: i32) -> (i32, i32, i32) {
    %c0_i32 = arith.constant 0 : i32
    %c0_i32_0 = arith.constant 0 : i32
    %c0_i32_1 = arith.constant 0 : i32
    return %arg1, %c0_i32, %c0_i32_0 : i32, i32, i32
  }
  func.func @transform_3(%arg0: i32, %arg1: i32) -> (i32, i32, i32) {
    %c0_i32 = arith.constant 0 : i32
    %c0_i32_0 = arith.constant 0 : i32
    %c0_i32_1 = arith.constant 0 : i32
    return %arg1, %c0_i32, %c0_i32_0 : i32, i32, i32
  }
  func.func @transform_4(%arg0: i32, %arg1: i32) -> (i32, i32, i32) {
    %c0_i32 = arith.constant 0 : i32
    %c0_i32_0 = arith.constant 0 : i32
    %c0_i32_1 = arith.constant 0 : i32
    return %arg1, %c0_i32, %c0_i32_0 : i32, i32, i32
  }
  func.func @transform_5(%arg0: i32, %arg1: i32) -> (i32, i32, i32) {
    %c0_i32 = arith.constant 0 : i32
    %c0_i32_0 = arith.constant 0 : i32
    %c0_i32_1 = arith.constant 0 : i32
    return %arg1, %c0_i32, %c0_i32_0 : i32, i32, i32
  }
  func.func @transform_6(%arg0: i32, %arg1: i32) -> (i32, i32, i32) {
    %c0_i32 = arith.constant 0 : i32
    %c0_i32_0 = arith.constant 0 : i32
    %c0_i32_1 = arith.constant 0 : i32
    return %arg1, %c0_i32, %c0_i32_0 : i32, i32, i32
  }
  func.func @transform_7(%arg0: i32, %arg1: i32) -> (i32, i32, i32) {
    %c0_i32 = arith.constant 0 : i32
    %c0_i32_0 = arith.constant 0 : i32
    %c0_i32_1 = arith.constant 0 : i32
    return %arg0, %c0_i32, %c0_i32_0 : i32, i32, i32
  }
}

</mosaic_0001>

<llo_original>
// kernel: tpu_custom_call.1
$region0: #{tpu_custom_call.1}
  #allocation0 [shape = 'u32[]', space=smem, size = 0x4, offset = 0x4, fixed_abs, tag = 'smem constant byte address 0x4 - core index']
  #allocation1 [shape = 'u32[72,128]{1,0:T(1,128)}', space=vmem, size = 0x9000, scoped, tag = 'internal scratch']
  %s0 = inlined_call_operand.vmem [shape: f32[2,16,32], index: 0, kind: input, shape index: {}]
  %s1 = inlined_call_operand.vmem [shape: bf16[2,32,96], index: 1, kind: input, shape index: {}]
  %s2 = inlined_call_operand.vmem [shape: f32[2,1,96], index: 2, kind: input, shape index: {}]
  %s3 = inlined_call_operand.vmem [shape: bf16[2,32,128], index: 3, kind: input, shape index: {}]
  %s4 = inlined_call_operand.vmem [shape: f32[2,1,128], index: 4, kind: input, shape index: {}]
  %s5 = inlined_call_operand.vmem [shape: bf16[2,128,32], index: 5, kind: input, shape index: {}]
  %s6 = inlined_call_operand.vmem [shape: f32[2,5,32], index: 6, kind: input, shape index: {}]
  %s7 = inlined_call_operand.hbm [shape: f32[2,16,32], index: 7, kind: output, shape index: {}]
  %s8 = sld [smem:[#allocation0]]
  $region93: #{tpu_custom_call.1} parent=0
    _
  %s10 = ssub.s32 1, %s8
  %s11 = scalar_select 0, %s10, %s8
  $region1: #{tpu_custom_call.1} parent=0
    #allocation2 [shape = 'u8[16384]{0}', space=vmem, size = 0x4000, scoped, tag = 'output window, operand 0']
    #allocation3 [shape = 's32[2]{0}', space=sflag, size = 0x8, scoped, tag = 'scoped memory for tpu_custom_call.1']
    %12 = vsyncpa [#allocation3], 0
    %s13 = scalar_lea.sflag [#allocation3], 1
    %14 = vsyncpa %s13, 0
    loop: start=0, step=1, limit=6
    $region2: #{tpu_custom_call.1} parent=1 // loop_pre_header
      _
    $region3: #{tpu_custom_call.1} parent=1 // loop_header
      %s16 = sphi 0, %s20
      %p17 = scmp.ge.s32.totalorder %s16, 6
      %s23 = sphi 0, %s35
      %s24 = sphi 0, %s31
      %s25 = sphi 0, %s23
      %s26 = sphi 0, %s24
      %s27 = sphi 0, %s25
      %s28 = sphi 0, %s26
      %s38 = sphi 0, %s40
      %s41 = sphi 0, %s38
      %s42 = sphi 0, %s41
      %s58 = sphi 0, %s42
      %s64 = sphi 0, %s66
      %s67 = sphi 0, %s64
      %s68 = sphi 0, %s67
      %s84 = sphi 0, %s68
      %s90 = sphi 0, %s92
      %s93 = sphi 0, %s90
      %s94 = sphi 0, %s93
      %s110 = sphi 0, %s94
      %s116 = sphi 0, %s118
      %s119 = sphi 0, %s116
      %s120 = sphi 0, %s119
      %s136 = sphi 0, %s120
      %s142 = sphi 0, %s144
      %s145 = sphi 0, %s142
      %s146 = sphi 0, %s145
      %s162 = sphi 0, %s146
      %s168 = sphi 0, %s170
      %s171 = sphi 0, %s168
      %s172 = sphi 0, %s171
      %s188 = sphi 0, %s172
      %s194 = sphi 0, %s196
      %s197 = sphi 0, %s194
      %s198 = sphi 0, %s197
      %s214 = sphi 0, %s198
      %s220 = sphi 0, %s222
      %s223 = sphi 0, %s220
      %s224 = sphi 0, %s223
      %s240 = sphi 0, %s224
    $region4: #{tpu_custom_call.1} parent=1 // loop_header_branch
      %19 = sbr.rel (%p17) target = $region8
    $region5: #{tpu_custom_call.1} parent=1 // loop_body
      %s21 = ssub.s32 %s16, 1
      %s22 = ssub.s32 %s16, 2
      %s29 = sadd.s32 1, %s24
      %p30 = scmp.ge.s32.totalorder %s29, 2
      %s31 = scalar_select %p30, 0, %s29
      %s32 = sadd.s32 1, %s23
      %s33 = scalar_select %p30, %s32, %s23
      %p34 = scmp.ge.s32.totalorder %s33, 2
      %s35 = scalar_select %p34, 0, %s33
      %s36 = ssub.s32 %s23, %s35
      %p37 = scmp.eq.s32.totalorder %s36, 0
      %s39 = sadd.s32 %s38, 1
      %s40 = scalar_select %p37, %s38, %s39
      %p43 = pneg %p37
      %p44 = scmp.eq.s32.totalorder %s16, 3
      %p45 = por %p43, %p44
      %p46 = scmp.ne.s32.totalorder %s38, %s41
      %p47 = scmp.eq.s32.totalorder %s16, 0
      %p48 = por %p46, %p47
      %p49 = scmp.ne.s32.totalorder %s38, %s41
      %p50 = scmp.eq.s32.totalorder %s21, 3
      %p51 = por %p49, %p50
      %p52 = scmp.ne.s32.totalorder %s41, %s42
      %p53 = scmp.eq.s32.totalorder %s21, 0
      %p54 = por %p52, %p53
      %p55 = scmp.ne.s32.totalorder %s41, %s42
      %p56 = scmp.eq.s32.totalorder %s22, 3
      %p57 = por %p55, %p56
      %p59 = scmp.ne.s32.totalorder %s42, %s58
      %p60 = scmp.eq.s32.totalorder %s22, 0
      %p61 = por %p59, %p60
      %s62 = ssub.s32 %s24, %s31
      %p63 = scmp.eq.s32.totalorder %s62, 0
      %s65 = sadd.s32 %s64, 1
      %s66 = scalar_select %p63, %s64, %s65
      %p69 = pneg %p63
      %p70 = scmp.eq.s32.totalorder %s16, 3
      %p71 = por %p69, %p70
      %p72 = scmp.ne.s32.totalorder %s64, %s67
      %p73 = scmp.eq.s32.totalorder %s16, 0
      %p74 = por %p72, %p73
      %p75 = scmp.ne.s32.totalorder %s64, %s67
      %p76 = scmp.eq.s32.totalorder %s21, 3
      %p77 = por %p75, %p76
      %p78 = scmp.ne.s32.totalorder %s67, %s68
      %p79 = scmp.eq.s32.totalorder %s21, 0
      %p80 = por %p78, %p79
      %p81 = scmp.ne.s32.totalorder %s67, %s68
      %p82 = scmp.eq.s32.totalorder %s22, 3
      %p83 = por %p81, %p82
      %p85 = scmp.ne.s32.totalorder %s68, %s84
      %p86 = scmp.eq.s32.totalorder %s22, 0
      %p87 = por %p85, %p86
      %s88 = ssub.s32 %s24, %s31
      %p89 = scmp.eq.s32.totalorder %s88, 0
      %s91 = sadd.s32 %s90, 1
      %s92 = scalar_select %p89, %s90, %s91
      %p95 = pneg %p89
      %p96 = scmp.eq.s32.totalorder %s16, 3
      %p97 = por %p95, %p96
      %p98 = scmp.ne.s32.totalorder %s90, %s93
      %p99 = scmp.eq.s32.totalorder %s16, 0
      %p100 = por %p98, %p99
      %p101 = scmp.ne.s32.totalorder %s90, %s93
      %p102 = scmp.eq.s32.totalorder %s21, 3
      %p103 = por %p101, %p102
      %p104 = scmp.ne.s32.totalorder %s93, %s94
      %p105 = scmp.eq.s32.totalorder %s21, 0
      %p106 = por %p104, %p105
      %p107 = scmp.ne.s32.totalorder %s93, %s94
      %p108 = scmp.eq.s32.totalorder %s22, 3
      %p109 = por %p107, %p108
      %p111 = scmp.ne.s32.totalorder %s94, %s110
      %p112 = scmp.eq.s32.totalorder %s22, 0
      %p113 = por %p111, %p112
      %s114 = ssub.s32 %s24, %s31
      %p115 = scmp.eq.s32.totalorder %s114, 0
      %s117 = sadd.s32 %s116, 1
      %s118 = scalar_select %p115, %s116, %s117
      %p121 = pneg %p115
      %p122 = scmp.eq.s32.totalorder %s16, 3
      %p123 = por %p121, %p122
      %p124 = scmp.ne.s32.totalorder %s116, %s119
      %p125 = scmp.eq.s32.totalorder %s16, 0
      %p126 = por %p124, %p125
      %p127 = scmp.ne.s32.totalorder %s116, %s119
      %p128 = scmp.eq.s32.totalorder %s21, 3
      %p129 = por %p127, %p128
      %p130 = scmp.ne.s32.totalorder %s119, %s120
      %p131 = scmp.eq.s32.totalorder %s21, 0
      %p132 = por %p130, %p131
      %p133 = scmp.ne.s32.totalorder %s119, %s120
      %p134 = scmp.eq.s32.totalorder %s22, 3
      %p135 = por %p133, %p134
      %p137 = scmp.ne.s32.totalorder %s120, %s136
      %p138 = scmp.eq.s32.totalorder %s22, 0
      %p139 = por %p137, %p138
      %s140 = ssub.s32 %s24, %s31
      %p141 = scmp.eq.s32.totalorder %s140, 0
      %s143 = sadd.s32 %s142, 1
      %s144 = scalar_select %p141, %s142, %s143
      %p147 = pneg %p141
      %p148 = scmp.eq.s32.totalorder %s16, 3
      %p149 = por %p147, %p148
      %p150 = scmp.ne.s32.totalorder %s142, %s145
      %p151 = scmp.eq.s32.totalorder %s16, 0
      %p152 = por %p150, %p151
      %p153 = scmp.ne.s32.totalorder %s142, %s145
      %p154 = scmp.eq.s32.totalorder %s21, 3
      %p155 = por %p153, %p154
      %p156 = scmp.ne.s32.totalorder %s145, %s146
      %p157 = scmp.eq.s32.totalorder %s21, 0
      %p158 = por %p156, %p157
      %p159 = scmp.ne.s32.totalorder %s145, %s146
      %p160 = scmp.eq.s32.totalorder %s22, 3
      %p161 = por %p159, %p160
      %p163 = scmp.ne.s32.totalorder %s146, %s162
      %p164 = scmp.eq.s32.totalorder %s22, 0
      %p165 = por %p163, %p164
      %s166 = ssub.s32 %s24, %s31
      %p167 = scmp.eq.s32.totalorder %s166, 0
      %s169 = sadd.s32 %s168, 1
      %s170 = scalar_select %p167, %s168, %s169
      %p173 = pneg %p167
      %p174 = scmp.eq.s32.totalorder %s16, 3
      %p175 = por %p173, %p174
      %p176 = scmp.ne.s32.totalorder %s168, %s171
      %p177 = scmp.eq.s32.totalorder %s16, 0
      %p178 = por %p176, %p177
      %p179 = scmp.ne.s32.totalorder %s168, %s171
      %p180 = scmp.eq.s32.totalorder %s21, 3
      %p181 = por %p179, %p180
      %p182 = scmp.ne.s32.totalorder %s171, %s172
      %p183 = scmp.eq.s32.totalorder %s21, 0
      %p184 = por %p182, %p183
      %p185 = scmp.ne.s32.totalorder %s171, %s172
      %p186 = scmp.eq.s32.totalorder %s22, 3
      %p187 = por %p185, %p186
      %p189 = scmp.ne.s32.totalorder %s172, %s188
      %p190 = scmp.eq.s32.totalorder %s22, 0
      %p191 = por %p189, %p190
      %s192 = ssub.s32 %s24, %s31
      %p193 = scmp.eq.s32.totalorder %s192, 0
      %s195 = sadd.s32 %s194, 1
      %s196 = scalar_select %p193, %s194, %s195
      %p199 = pneg %p193
      %p200 = scmp.eq.s32.totalorder %s16, 3
      %p201 = por %p199, %p200
      %p202 = scmp.ne.s32.totalorder %s194, %s197
      %p203 = scmp.eq.s32.totalorder %s16, 0
      %p204 = por %p202, %p203
      %p205 = scmp.ne.s32.totalorder %s194, %s197
      %p206 = scmp.eq.s32.totalorder %s21, 3
      %p207 = por %p205, %p206
      %p208 = scmp.ne.s32.totalorder %s197, %s198
      %p209 = scmp.eq.s32.totalorder %s21, 0
      %p210 = por %p208, %p209
      %p211 = scmp.ne.s32.totalorder %s197, %s198
      %p212 = scmp.eq.s32.totalorder %s22, 3
      %p213 = por %p211, %p212
      %p215 = scmp.ne.s32.totalorder %s198, %s214
      %p216 = scmp.eq.s32.totalorder %s22, 0
      %p217 = por %p215, %p216
      %s218 = ssub.s32 %s23, %s35
      %p219 = scmp.eq.s32.totalorder %s218, 0
      %s221 = sadd.s32 %s220, 1
      %s222 = scalar_select %p219, %s220, %s221
      %p225 = pneg %p219
      %p226 = scmp.eq.s32.totalorder %s16, 3
      %p227 = por %p225, %p226
      %p228 = scmp.ne.s32.totalorder %s220, %s223
      %p229 = scmp.eq.s32.totalorder %s16, 0
      %p230 = por %p228, %p229
      %p231 = scmp.ne.s32.totalorder %s220, %s223
      %p232 = scmp.eq.s32.totalorder %s21, 3
      %p233 = por %p231, %p232
      %p234 = scmp.ne.s32.totalorder %s223, %s224
      %p235 = scmp.eq.s32.totalorder %s21, 0
      %p236 = por %p234, %p235
      %p237 = scmp.ne.s32.totalorder %s223, %s224
      %p238 = scmp.eq.s32.totalorder %s22, 3
      %p239 = por %p237, %p238
      %p241 = scmp.ne.s32.totalorder %s224, %s240
      %p242 = scmp.eq.s32.totalorder %s22, 0
      %p243 = por %p241, %p242
      %p244 = scmp.le.s32.totalorder 1, %s16
      %p245 = scmp.lt.s32.totalorder %s16, 5
      %p246 = pnand %p244, %p245
      %p247 = pneg %p246
      // Predicated region
      $region9: #{tpu_custom_call.1} parent=5 // pred_check
        _
      $region10: #{tpu_custom_call.1} parent=5 // pred_check_branch
        %249 = sbr.rel (%p246) target = $region12
      $region11: #{tpu_custom_call.1} parent=5 // pred_region
        %s250 = ssub.s32 %s16, 1
      $region12: #{tpu_custom_call.1} parent=5 // pred_fallthru
        _
      %p251 = scmp.lt.s32.totalorder %s16, 4
      // Predicated region
      $region13: #{tpu_custom_call.1} parent=5 // pred_check
        %p252 = pneg %p251
      $region14: #{tpu_custom_call.1} parent=5 // pred_check_branch
        %254 = sbr.rel (%p252) target = $region16
      $region15: #{tpu_custom_call.1} parent=5 // pred_region
        // Predicated region
        $region17: #{tpu_custom_call.1} parent=15 // pred_check
          %p255 = pneg %p48
        $region18: #{tpu_custom_call.1} parent=15 // pred_check_branch
          %257 = sbr.rel (%p255) target = $region20
        $region19: #{tpu_custom_call.1} parent=15 // pred_region
          %p258 = scmp.lt.s32.totalorder %s23, 1
          %s259 = scalar_select %p258, %s23, 1
          %s260 = smul.addr %s259, 2
          %s261 = smul.addr %s260, 8
          %s262 = scalar_lea.vmem %s0, %s261
        $region20: #{tpu_custom_call.1} parent=15 // pred_fallthru
          _
        // Predicated region
        $region21: #{tpu_custom_call.1} parent=15 // pred_check
          %p263 = pneg %p74
        $region22: #{tpu_custom_call.1} parent=15 // pred_check_branch
          %265 = sbr.rel (%p263) target = $region24
        $region23: #{tpu_custom_call.1} parent=15 // pred_region
          %p266 = scmp.lt.s32.totalorder %s24, 1
          %s267 = scalar_select %p266, %s24, 1
          %s268 = smul.addr %s267, 4
          %s269 = smul.addr %s268, 4
          %s270 = scalar_lea.vmem %s1, %s269
        $region24: #{tpu_custom_call.1} parent=15 // pred_fallthru
          _
        // Predicated region
        $region25: #{tpu_custom_call.1} parent=15 // pred_check
          %p271 = pneg %p100
        $region26: #{tpu_custom_call.1} parent=15 // pred_check_branch
          %273 = sbr.rel (%p271) target = $region28
        $region27: #{tpu_custom_call.1} parent=15 // pred_region
          %p274 = scmp.lt.s32.totalorder %s24, 1
          %s275 = scalar_select %p274, %s24, 1
          %s276 = scalar_lea.vmem %s2, %s275
        $region28: #{tpu_custom_call.1} parent=15 // pred_fallthru
          _
        // Predicated region
        $region29: #{tpu_custom_call.1} parent=15 // pred_check
          %p277 = pneg %p126
        $region30: #{tpu_custom_call.1} parent=15 // pred_check_branch
          %279 = sbr.rel (%p277) target = $region32
        $region31: #{tpu_custom_call.1} parent=15 // pred_region
          %p280 = scmp.lt.s32.totalorder %s24, 1
          %s281 = scalar_select %p280, %s24, 1
          %s282 = smul.addr %s281, 4
          %s283 = smul.addr %s282, 4
          %s284 = scalar_lea.vmem %s3, %s283
        $region32: #{tpu_custom_call.1} parent=15 // pred_fallthru
          _
        // Predicated region
        $region33: #{tpu_custom_call.1} parent=15 // pred_check
          %p285 = pneg %p152
        $region34: #{tpu_custom_call.1} parent=15 // pred_check_branch
          %287 = sbr.rel (%p285) target = $region36
        $region35: #{tpu_custom_call.1} parent=15 // pred_region
          %p288 = scmp.lt.s32.totalorder %s24, 1
          %s289 = scalar_select %p288, %s24, 1
          %s290 = scalar_lea.vmem %s4, %s289
        $region36: #{tpu_custom_call.1} parent=15 // pred_fallthru
          _
        // Predicated region
        $region37: #{tpu_custom_call.1} parent=15 // pred_check
          %p291 = pneg %p178
        $region38: #{tpu_custom_call.1} parent=15 // pred_check_branch
          %293 = sbr.rel (%p291) target = $region40
        $region39: #{tpu_custom_call.1} parent=15 // pred_region
          %p294 = scmp.lt.s32.totalorder %s24, 1
          %s295 = scalar_select %p294, %s24, 1
          %s296 = smul.addr %s295, 16
          %s297 = smul.addr %s296, 4
          %s298 = scalar_lea.vmem %s5, %s297
        $region40: #{tpu_custom_call.1} parent=15 // pred_fallthru
          _
        // Predicated region
        $region41: #{tpu_custom_call.1} parent=15 // pred_check
          %p299 = pneg %p204
        $region42: #{tpu_custom_call.1} parent=15 // pred_check_branch
          %301 = sbr.rel (%p299) target = $region44
        $region43: #{tpu_custom_call.1} parent=15 // pred_region
          %p302 = scmp.lt.s32.totalorder %s24, 1
          %s303 = scalar_select %p302, %s24, 1
          %s304 = smul.addr %s303, 8
          %s305 = scalar_lea.vmem %s6, %s304
        $region44: #{tpu_custom_call.1} parent=15 // pred_fallthru
          _
      $region16: #{tpu_custom_call.1} parent=5 // pred_fallthru
        _
      %p306 = scmp.le.s32.totalorder 1, %s16
      %p307 = scmp.lt.s32.totalorder %s16, 5
      %p308 = pnand %p306, %p307
      %p309 = pneg %p308
      // Predicated region
      $region45: #{tpu_custom_call.1} parent=5 // pred_check
        _
      $region46: #{tpu_custom_call.1} parent=5 // pred_check_branch
        %311 = sbr.rel (%p308) target = $region48
      $region47: #{tpu_custom_call.1} parent=5 // pred_region
        %s312 = ssub.s32 %s16, 1
        %p313 = scmp.lt.s32.totalorder %s25, 1
        %s314 = scalar_select %p313, %s25, 1
        %s315 = smul.addr %s314, 2
        %s316 = smul.addr %s315, 8
        %s317 = scalar_lea.vmem %s0, %s316
        %p318 = pneg %p54
        %p319 = pneg %p51
        %p320 = scmp.lt.s32.totalorder %s26, 1
        %s321 = scalar_select %p320, %s26, 1
        %s322 = smul.addr %s321, 4
        %s323 = smul.addr %s322, 4
        %s324 = scalar_lea.vmem %s1, %s323
        %p325 = pneg %p80
        %p326 = pneg %p77
        %p327 = scmp.lt.s32.totalorder %s26, 1
        %s328 = scalar_select %p327, %s26, 1
        %s329 = scalar_lea.vmem %s2, %s328
        %p330 = pneg %p106
        %p331 = pneg %p103
        %p332 = scmp.lt.s32.totalorder %s26, 1
        %s333 = scalar_select %p332, %s26, 1
        %s334 = smul.addr %s333, 4
        %s335 = smul.addr %s334, 4
        %s336 = scalar_lea.vmem %s3, %s335
        %p337 = pneg %p132
        %p338 = pneg %p129
        %p339 = scmp.lt.s32.totalorder %s26, 1
        %s340 = scalar_select %p339, %s26, 1
        %s341 = scalar_lea.vmem %s4, %s340
        %p342 = pneg %p158
        %p343 = pneg %p155
        %p344 = scmp.lt.s32.totalorder %s26, 1
        %s345 = scalar_select %p344, %s26, 1
        %s346 = smul.addr %s345, 16
        %s347 = smul.addr %s346, 4
        %s348 = scalar_lea.vmem %s5, %s347
        %p349 = pneg %p184
        %p350 = pneg %p181
        %p351 = scmp.lt.s32.totalorder %s26, 1
        %s352 = scalar_select %p351, %s26, 1
        %s353 = smul.addr %s352, 8
        %s354 = scalar_lea.vmem %s6, %s353
        %p355 = pneg %p210
        %p356 = pneg %p207
        %p357 = pneg %p236
        %p358 = pneg %p233
        %s359 = sand.u32 %s223, 1
        %s360 = scalar_lea.sflag [#allocation3], %s359
        %s361 = sand.u32 %s223, 1
        %s362 = smul.addr %s361, 16
        %s363 = scalar_lea.vmem [#allocation2], %s362
        %p364 = scmp.lt.s32.totalorder %s25, 1
        %s365 = scalar_select %p364, %s25, 1
        %s366 = smul.addr %s365, 2
        %s367 = smul.addr %s366, 8
        %s368 = scalar_lea.vmem %s0, %s367
        %p369 = scmp.lt.s32.totalorder %s26, 1
        %s370 = scalar_select %p369, %s26, 1
        %s371 = smul.addr %s370, 4
        %s372 = smul.addr %s371, 4
        %s373 = scalar_lea.vmem %s1, %s372
        %p374 = scmp.lt.s32.totalorder %s26, 1
        %s375 = scalar_select %p374, %s26, 1
        %s376 = scalar_lea.vmem %s2, %s375
        %p377 = scmp.lt.s32.totalorder %s26, 1
        %s378 = scalar_select %p377, %s26, 1
        %s379 = smul.addr %s378, 4
        %s380 = smul.addr %s379, 4
        %s381 = scalar_lea.vmem %s3, %s380
        %p382 = scmp.lt.s32.totalorder %s26, 1
        %s383 = scalar_select %p382, %s26, 1
        %s384 = scalar_lea.vmem %s4, %s383
        %p385 = scmp.lt.s32.totalorder %s26, 1
        %s386 = scalar_select %p385, %s26, 1
        %s387 = smul.addr %s386, 16
        %s388 = smul.addr %s387, 4
        %s389 = scalar_lea.vmem %s5, %s388
        %p390 = scmp.lt.s32.totalorder %s26, 1
        %s391 = scalar_select %p390, %s26, 1
        %s392 = smul.addr %s391, 8
        %s393 = scalar_lea.vmem %s6, %s392
        %p395 = scmp.eq.s32.totalorder %s26, 0
        // Predicated region
        $region49: #{tpu_custom_call.1} parent=47 // pred_check
          %p396 = pneg %p395
        $region50: #{tpu_custom_call.1} parent=47 // pred_check_branch
          %398 = sbr.rel (%p396) target = $region52
        $region51: #{tpu_custom_call.1} parent=47 // pred_region
          %v399 = vld [vmem:[%s368] sm:$0xff]
          %v400 = vld [vmem:[%s368 + $0x8] sm:$0xff]
          %vm401 = vcmask 261120
          %402 = vst.msk [vmem:[%s363] sm:$0xff] %vm401, %v399
          %403 = vst.msk [vmem:[%s363 + $0x8] sm:$0xff] %vm401, %v400
        $region52: #{tpu_custom_call.1} parent=47 // pred_fallthru
          _
        %v404 = vld [vmem:[%s363] sm:$0xff]
        %v405 = vld [vmem:[%s363 + $0x8] sm:$0xff]
        %v406 = vpack.c.bf16 %v405, %v404
        %v407 = vld [vmem:[%s373] sm:$0xf]
        %v408 = vld [vmem:[%s373 + $0x4] sm:$0xf]
        %v409 = vld [vmem:[%s373 + $0x8] sm:$0xf]
        %v410 = vld [vmem:[%s373 + $0xc] sm:$0xf]
        %v411 = vld [vmem:[%s376] sm:$0x1]
        %v413 = vperm.slane %v411, 0
        %v419 = vunpack.c.l.b16 %v407
        %v420 = vunpack.c.l.b16 %v408
        %v421 = vunpack.c.l.b16 %v409
        %v422 = vunpack.c.l.b16 %v410
        %v423 = vpack.c.b16 %v420, %v419
        %v424 = vpack.c.b16 %v422, %v421
        %vm427 = vcmask 261120
        %v429 = vsel %vm427, %v406, 0
        %431 = vmatpush.bf16.msra.mxu0 0
        %432 = vmatpush.bf16.msra.mxu0 0
        %433 = vmatpush.bf16.msra.mxu0 0
        %434 = vmatpush.bf16.msra.mxu0 0
        %435 = vmatpush.bf16.msra.mxu0 0
        %436 = vmatpush.bf16.msra.mxu0 0
        %437 = vmatpush.bf16.msra.mxu0 %v424
        %438 = vmatpush.bf16.msra.mxu0 %v423
        %439 = vmatmul.bf16.gmra.mxu0 %v429
        %v440 = vpop.f32.mrf.mxu0
        %v441 = vadd.f32 %v413, %v440
        %v442 = vpop.f32.mrf.mxu0
        %v443 = vadd.f32 %v413, %v442
        %444 = vdwg.mxu0
        %v445 = vpack.c.bf16 %v443, %v441
        %v446 = vlaneseq
        %v447 = vand.u32 %v446, 127
        %vm448 = vcmp.ge.s32.totalorder %v447, 0
        %vm449 = vcmp.lt.s32.totalorder %v447, 8
        %vm450 = vmand %vm448, %vm449
        %v451 = vsel %vm450, %v441, 0.0
        %v452 = vsel %vm450, %v443, 0.0
        %v453 = vpack.c.bf16 %v452, %v451
        %455 = vrot.lane.b32.xlu0 %v445, 96
        %v456 = vpop.permute.xlu0 %455
        %v458 = vsel %vm427, %v453, 0
        %v461 = vsel %vm427, %v456, 0
        %463 = vmatpush.bf16.xpose.msra.mxu0 0
        %464 = vmatpush.bf16.xpose.msra.mxu0 0
        %465 = vmatpush.bf16.xpose.msra.mxu0 0
        %466 = vmatpush.bf16.xpose.msra.mxu0 0
        %467 = vmatpush.bf16.xpose.msra.mxu0 0
        %468 = vmatpush.bf16.xpose.msra.mxu0 0
        %469 = vmatpush.bf16.xpose.msra.mxu0 0
        %470 = vmatpush.bf16.xpose.msra.mxu0 %v461
        %471 = vmatmul.bf16.gmra.mxu0 %v458
        %v472 = vpop.f32.mrf.mxu0
        %v473 = vadd.f32 0.0, %v472
        %v474 = vpop.f32.mrf.mxu0
        %v475 = vadd.f32 0.0, %v474
        %476 = vdwg.mxu0
        loop: start=0, step=1, limit=13
        $region53: #{tpu_custom_call.1} parent=47 // loop_pre_header
          _
        $region54: #{tpu_custom_call.1} parent=47 // loop_header
          %s478 = sphi 0, %s482
          %p479 = scmp.ge.s32.totalorder %s478, 13
          %v483 = vphi %v473, %v496
          %v484 = vphi %v475, %v497
          %v485 = vphi 0.0, %v490
          %v486 = vphi 0.0, %v493
        $region55: #{tpu_custom_call.1} parent=47 // loop_header_branch
          %481 = sbr.rel (%p479) target = $region59
        $region56: #{tpu_custom_call.1} parent=47 // loop_body
          %vm487 = vcmask 130048
          %v488 = vsel %vm487, %v483, -inf
          %489 = vmax.xlane.f32.xlu0 %v488
          %v490 = vpop.xlane.xlu0 %489
          %v491 = vsel %vm487, %v484, -inf
          %492 = vmax.xlane.f32.xlu0 %v491
          %v493 = vpop.xlane.xlu0 %492
          %vm494 = vcmp.ge.f32.partialorder %v483, %v490
          %vm495 = vcmp.ge.f32.partialorder %v484, %v493
          %v496 = vsel %vm494, -inf, %v483
          %v497 = vsel %vm495, -inf, %v484
        $region57: #{tpu_custom_call.1} parent=47 // loop_footer
          %s482 = sadd.s32 1, %s478
        $region58: #{tpu_custom_call.1} parent=47 // loop_footer_branch
          %477 = sbr.rel target = $region54
        $region59: #{tpu_custom_call.1} parent=47 // loop_exit
          _
        %vm498 = vcmp.ge.f32.partialorder %v473, %v485
        %vm499 = vcmp.ge.f32.partialorder %v475, %v486
        %v500 = vsel %vm498, %v473, 0.0
        %v501 = vsel %vm499, %v475, 0.0
        %vm502 = vcmask 130048
        %v503 = vsel %vm502, %v500, -inf
        %504 = vmax.xlane.f32.xlu0 %v503
        %v505 = vpop.xlane.xlu0 %504
        %v506 = vsel %vm502, %v501, -inf
        %507 = vmax.xlane.f32.xlu0 %v506
        %v508 = vpop.xlane.xlu0 %507
        %v509 = vsub.f32 %v500, %v505
        %v510 = vsub.f32 %v501, %v508
        %v511 = vmul.f32 %v509, 1.442695
        %v512 = vpow.pop %v511
        %v513 = vmul.f32 %v510, 1.442695
        %v514 = vpow.pop %v513
        %v515 = vsel %vm502, %v512, 0.0
        %516 = vadd.xlane.f32.xlu0 %v515
        %v517 = vpop.xlane.xlu0 %516
        %v518 = vsel %vm502, %v514, 0.0
        %519 = vadd.xlane.f32.xlu0 %v518
        %v520 = vpop.xlane.xlu0 %519
        %v521 = vrcp.pop %v517
        %v522 = vmul.f32 %v517, %v521
        %v523 = vsub.f32 1.0, %v522
        %v524 = vmul.f32 %v521, %v523
        %v525 = vadd.f32 %v521, %v524
        %vm526 = vweird.f32 %v517
        %vm527 = vweird.f32 %v521
        %vm528 = vmor %vm526, %vm527
        %v529 = vsel %vm528, %v521, %v525
        %v530 = vand.u32 2147483647, %v517
        %vm531 = vcmp.eq.f32.partialorder %v530, 8.507059e+37
        %v532 = vand.u32 %v517, 2147483648
        %v533 = vor.u32 1.1754944e-38, %v532
        %v534 = vsel %vm531, %v533, %v529
        %v535 = vrcp.pop %v520
        %v536 = vmul.f32 %v520, %v535
        %v537 = vsub.f32 1.0, %v536
        %v538 = vmul.f32 %v535, %v537
        %v539 = vadd.f32 %v535, %v538
        %vm540 = vweird.f32 %v520
        %vm541 = vweird.f32 %v535
        %vm542 = vmor %vm540, %vm541
        %v543 = vsel %vm542, %v535, %v539
        %v544 = vand.u32 2147483647, %v520
        %vm545 = vcmp.eq.f32.partialorder %v544, 8.507059e+37
        %v546 = vand.u32 %v520, 2147483648
        %v547 = vor.u32 1.1754944e-38, %v546
        %v548 = vsel %vm545, %v547, %v543
        %v549 = vmul.f32 %v512, %v534
        %v550 = vmul.f32 %v514, %v548
        %553 = vrot.lane.b32.xlu0 %v441, 64
        %v554 = vpop.permute.xlu0 %553
        %555 = vrot.lane.b32.xlu0 %v443, 64
        %v556 = vpop.permute.xlu0 %555
        %v559 = vsel %vm450, %v554, 0.0
        %v560 = vsel %vm450, %v556, 0.0
        %v561 = vpack.c.bf16 %v560, %v559
        %v562 = vpack.c.bf16 %v550, %v549
        %vm563 = vcmp.ge.s32.totalorder %v447, 8
        %vm564 = vcmp.lt.s32.totalorder %v447, 16
        %vm565 = vmand %vm563, %vm564
        %v566 = vsel %vm565, %v441, 0.0
        %v567 = vsel %vm565, %v443, 0.0
        %v568 = vpack.c.bf16 %v567, %v566
        %v570 = vsel %vm427, %v568, 0
        %572 = vmatpush.bf16.xpose.msra.mxu0 0
        %573 = vmatpush.bf16.xpose.msra.mxu0 0
        %574 = vmatpush.bf16.xpose.msra.mxu0 0
        %575 = vmatpush.bf16.xpose.msra.mxu0 0
        %576 = vmatpush.bf16.xpose.msra.mxu0 0
        %577 = vmatpush.bf16.xpose.msra.mxu0 0
        %578 = vmatpush.bf16.xpose.msra.mxu0 0
        %579 = vmatpush.bf16.xpose.msra.mxu0 %v461
        %580 = vmatmul.bf16.gmra.mxu0 %v570
        %v581 = vpop.f32.mrf.mxu0
        %v582 = vadd.f32 0.0, %v581
        %v583 = vpop.f32.mrf.mxu0
        %v584 = vadd.f32 0.0, %v583
        %585 = vdwg.mxu0
        loop: start=0, step=1, limit=13
        $region60: #{tpu_custom_call.1} parent=47 // loop_pre_header
          _
        $region61: #{tpu_custom_call.1} parent=47 // loop_header
          %s587 = sphi 0, %s591
          %p588 = scmp.ge.s32.totalorder %s587, 13
          %v592 = vphi %v582, %v604
          %v593 = vphi %v584, %v605
          %v594 = vphi 0.0, %v598
          %v595 = vphi 0.0, %v601
        $region62: #{tpu_custom_call.1} parent=47 // loop_header_branch
          %590 = sbr.rel (%p588) target = $region66
        $region63: #{tpu_custom_call.1} parent=47 // loop_body
          %v596 = vsel %vm502, %v592, -inf
          %597 = vmax.xlane.f32.xlu0 %v596
          %v598 = vpop.xlane.xlu0 %597
          %v599 = vsel %vm502, %v593, -inf
          %600 = vmax.xlane.f32.xlu0 %v599
          %v601 = vpop.xlane.xlu0 %600
          %vm602 = vcmp.ge.f32.partialorder %v592, %v598
          %vm603 = vcmp.ge.f32.partialorder %v593, %v601
          %v604 = vsel %vm602, -inf, %v592
          %v605 = vsel %vm603, -inf, %v593
        $region64: #{tpu_custom_call.1} parent=47 // loop_footer
          %s591 = sadd.s32 1, %s587
        $region65: #{tpu_custom_call.1} parent=47 // loop_footer_branch
          %586 = sbr.rel target = $region61
        $region66: #{tpu_custom_call.1} parent=47 // loop_exit
          _
        %vm606 = vcmp.ge.f32.partialorder %v582, %v594
        %vm607 = vcmp.ge.f32.partialorder %v584, %v595
        %v608 = vsel %vm606, %v582, 0.0
        %v609 = vsel %vm607, %v584, 0.0
        %v610 = vsel %vm502, %v608, -inf
        %611 = vmax.xlane.f32.xlu0 %v610
        %v612 = vpop.xlane.xlu0 %611
        %v613 = vsel %vm502, %v609, -inf
        %614 = vmax.xlane.f32.xlu0 %v613
        %v615 = vpop.xlane.xlu0 %614
        %v616 = vsub.f32 %v608, %v612
        %v617 = vsub.f32 %v609, %v615
        %v618 = vmul.f32 %v616, 1.442695
        %v619 = vpow.pop %v618
        %v620 = vmul.f32 %v617, 1.442695
        %v621 = vpow.pop %v620
        %v622 = vsel %vm502, %v619, 0.0
        %623 = vadd.xlane.f32.xlu0 %v622
        %v624 = vpop.xlane.xlu0 %623
        %v625 = vsel %vm502, %v621, 0.0
        %626 = vadd.xlane.f32.xlu0 %v625
        %v627 = vpop.xlane.xlu0 %626
        %v628 = vrcp.pop %v624
        %v629 = vmul.f32 %v624, %v628
        %v630 = vsub.f32 1.0, %v629
        %v631 = vmul.f32 %v628, %v630
        %v632 = vadd.f32 %v628, %v631
        %vm633 = vweird.f32 %v624
        %vm634 = vweird.f32 %v628
        %vm635 = vmor %vm633, %vm634
        %v636 = vsel %vm635, %v628, %v632
        %v637 = vand.u32 2147483647, %v624
        %vm638 = vcmp.eq.f32.partialorder %v637, 8.507059e+37
        %v639 = vand.u32 %v624, 2147483648
        %v640 = vor.u32 1.1754944e-38, %v639
        %v641 = vsel %vm638, %v640, %v636
        %v642 = vrcp.pop %v627
        %v643 = vmul.f32 %v627, %v642
        %v644 = vsub.f32 1.0, %v643
        %v645 = vmul.f32 %v642, %v644
        %v646 = vadd.f32 %v642, %v645
        %vm647 = vweird.f32 %v627
        %vm648 = vweird.f32 %v642
        %vm649 = vmor %vm647, %vm648
        %v650 = vsel %vm649, %v642, %v646
        %v651 = vand.u32 2147483647, %v627
        %vm652 = vcmp.eq.f32.partialorder %v651, 8.507059e+37
        %v653 = vand.u32 %v627, 2147483648
        %v654 = vor.u32 1.1754944e-38, %v653
        %v655 = vsel %vm652, %v654, %v650
        %v656 = vmul.f32 %v619, %v641
        %v657 = vmul.f32 %v621, %v655
        %v658 = vsel %vm565, %v554, 0.0
        %v659 = vsel %vm565, %v556, 0.0
        %v660 = vpack.c.bf16 %v659, %v658
        %v661 = vpack.c.bf16 %v657, %v656
        %v663 = vsel %vm502, %v661, 0
        %665 = vmatpush.bf16.msra.mxu0 0
        %666 = vmatpush.bf16.msra.mxu0 0
        %667 = vmatpush.bf16.msra.mxu0 0
        %668 = vmatpush.bf16.msra.mxu0 0
        %669 = vmatpush.bf16.msra.mxu0 0
        %670 = vmatpush.bf16.msra.mxu0 0
        %671 = vmatpush.bf16.msra.mxu0 0
        %672 = vmatpush.bf16.msra.mxu0 %v660
        %673 = vmatmul.bf16.gmra.mxu0 %v663
        %v674 = vpop.f32.mrf.mxu0
        %v675 = vadd.f32 0.0, %v674
        %v676 = vpop.f32.mrf.mxu0
        %v677 = vadd.f32 0.0, %v676
        %678 = vdwg.mxu0
        %v680 = vsel %vm502, %v562, 0
        %682 = vmatpush.bf16.msra.mxu0 0
        %683 = vmatpush.bf16.msra.mxu0 0
        %684 = vmatpush.bf16.msra.mxu0 0
        %685 = vmatpush.bf16.msra.mxu0 0
        %686 = vmatpush.bf16.msra.mxu0 0
        %687 = vmatpush.bf16.msra.mxu0 0
        %688 = vmatpush.bf16.msra.mxu0 0
        %689 = vmatpush.bf16.msra.mxu0 %v561
        %690 = vmatmul.bf16.gmra.mxu0 %v680
        %v691 = vpop.f32.mrf.mxu0
        %v692 = vadd.f32 %v675, %v691
        %v693 = vpop.f32.mrf.mxu0
        %v694 = vadd.f32 %v677, %v693
        %695 = vdwg.mxu0
        %vm696 = vcmp.ge.s32.totalorder %v447, 16
        %vm697 = vcmp.lt.s32.totalorder %v447, 24
        %vm698 = vmand %vm696, %vm697
        %v699 = vsel %vm698, %v441, 0.0
        %v700 = vsel %vm698, %v443, 0.0
        %v701 = vpack.c.bf16 %v700, %v699
        %v703 = vsel %vm427, %v701, 0
        %705 = vmatpush.bf16.xpose.msra.mxu0 0
        %706 = vmatpush.bf16.xpose.msra.mxu0 0
        %707 = vmatpush.bf16.xpose.msra.mxu0 0
        %708 = vmatpush.bf16.xpose.msra.mxu0 0
        %709 = vmatpush.bf16.xpose.msra.mxu0 0
        %710 = vmatpush.bf16.xpose.msra.mxu0 0
        %711 = vmatpush.bf16.xpose.msra.mxu0 0
        %712 = vmatpush.bf16.xpose.msra.mxu0 %v461
        %713 = vmatmul.bf16.gmra.mxu0 %v703
        %v714 = vpop.f32.mrf.mxu0
        %v715 = vadd.f32 0.0, %v714
        %v716 = vpop.f32.mrf.mxu0
        %v717 = vadd.f32 0.0, %v716
        %718 = vdwg.mxu0
        loop: start=0, step=1, limit=13
        $region67: #{tpu_custom_call.1} parent=47 // loop_pre_header
          _
        $region68: #{tpu_custom_call.1} parent=47 // loop_header
          %s720 = sphi 0, %s724
          %p721 = scmp.ge.s32.totalorder %s720, 13
          %v725 = vphi %v715, %v737
          %v726 = vphi %v717, %v738
          %v727 = vphi 0.0, %v731
          %v728 = vphi 0.0, %v734
        $region69: #{tpu_custom_call.1} parent=47 // loop_header_branch
          %723 = sbr.rel (%p721) target = $region73
        $region70: #{tpu_custom_call.1} parent=47 // loop_body
          %v729 = vsel %vm502, %v725, -inf
          %730 = vmax.xlane.f32.xlu0 %v729
          %v731 = vpop.xlane.xlu0 %730
          %v732 = vsel %vm502, %v726, -inf
          %733 = vmax.xlane.f32.xlu0 %v732
          %v734 = vpop.xlane.xlu0 %733
          %vm735 = vcmp.ge.f32.partialorder %v725, %v731
          %vm736 = vcmp.ge.f32.partialorder %v726, %v734
          %v737 = vsel %vm735, -inf, %v725
          %v738 = vsel %vm736, -inf, %v726
        $region71: #{tpu_custom_call.1} parent=47 // loop_footer
          %s724 = sadd.s32 1, %s720
        $region72: #{tpu_custom_call.1} parent=47 // loop_footer_branch
          %719 = sbr.rel target = $region68
        $region73: #{tpu_custom_call.1} parent=47 // loop_exit
          _
        %vm739 = vcmp.ge.f32.partialorder %v715, %v727
        %vm740 = vcmp.ge.f32.partialorder %v717, %v728
        %v741 = vsel %vm739, %v715, 0.0
        %v742 = vsel %vm740, %v717, 0.0
        %v743 = vsel %vm502, %v741, -inf
        %744 = vmax.xlane.f32.xlu0 %v743
        %v745 = vpop.xlane.xlu0 %744
        %v746 = vsel %vm502, %v742, -inf
        %747 = vmax.xlane.f32.xlu0 %v746
        %v748 = vpop.xlane.xlu0 %747
        %v749 = vsub.f32 %v741, %v745
        %v750 = vsub.f32 %v742, %v748
        %v751 = vmul.f32 %v749, 1.442695
        %v752 = vpow.pop %v751
        %v753 = vmul.f32 %v750, 1.442695
        %v754 = vpow.pop %v753
        %v755 = vsel %vm502, %v752, 0.0
        %756 = vadd.xlane.f32.xlu0 %v755
        %v757 = vpop.xlane.xlu0 %756
        %v758 = vsel %vm502, %v754, 0.0
        %759 = vadd.xlane.f32.xlu0 %v758
        %v760 = vpop.xlane.xlu0 %759
        %v761 = vrcp.pop %v757
        %v762 = vmul.f32 %v757, %v761
        %v763 = vsub.f32 1.0, %v762
        %v764 = vmul.f32 %v761, %v763
        %v765 = vadd.f32 %v761, %v764
        %vm766 = vweird.f32 %v757
        %vm767 = vweird.f32 %v761
        %vm768 = vmor %vm766, %vm767
        %v769 = vsel %vm768, %v761, %v765
        %v770 = vand.u32 2147483647, %v757
        %vm771 = vcmp.eq.f32.partialorder %v770, 8.507059e+37
        %v772 = vand.u32 %v757, 2147483648
        %v773 = vor.u32 1.1754944e-38, %v772
        %v774 = vsel %vm771, %v773, %v769
        %v775 = vrcp.pop %v760
        %v776 = vmul.f32 %v760, %v775
        %v777 = vsub.f32 1.0, %v776
        %v778 = vmul.f32 %v775, %v777
        %v779 = vadd.f32 %v775, %v778
        %vm780 = vweird.f32 %v760
        %vm781 = vweird.f32 %v775
        %vm782 = vmor %vm780, %vm781
        %v783 = vsel %vm782, %v775, %v779
        %v784 = vand.u32 2147483647, %v760
        %vm785 = vcmp.eq.f32.partialorder %v784, 8.507059e+37
        %v786 = vand.u32 %v760, 2147483648
        %v787 = vor.u32 1.1754944e-38, %v786
        %v788 = vsel %vm785, %v787, %v783
        %v789 = vmul.f32 %v752, %v774
        %v790 = vmul.f32 %v754, %v788
        %v791 = vsel %vm698, %v554, 0.0
        %v792 = vsel %vm698, %v556, 0.0
        %v793 = vpack.c.bf16 %v792, %v791
        %v794 = vpack.c.bf16 %v790, %v789
        %v796 = vsel %vm502, %v794, 0
        %798 = vmatpush.bf16.msra.mxu0 0
        %799 = vmatpush.bf16.msra.mxu0 0
        %800 = vmatpush.bf16.msra.mxu0 0
        %801 = vmatpush.bf16.msra.mxu0 0
        %802 = vmatpush.bf16.msra.mxu0 0
        %803 = vmatpush.bf16.msra.mxu0 0
        %804 = vmatpush.bf16.msra.mxu0 0
        %805 = vmatpush.bf16.msra.mxu0 %v793
        %806 = vmatmul.bf16.gmra.mxu0 %v796
        %v807 = vpop.f32.mrf.mxu0
        %v808 = vadd.f32 0.0, %v807
        %v809 = vpop.f32.mrf.mxu0
        %v810 = vadd.f32 0.0, %v809
        %811 = vdwg.mxu0
        %v812 = vadd.f32 %v692, %v808
        %v813 = vadd.f32 %v694, %v810
        %vm814 = vcmp.ge.s32.totalorder %v447, 24
        %vm815 = vcmp.lt.s32.totalorder %v447, 32
        %vm816 = vmand %vm814, %vm815
        %v817 = vsel %vm816, %v441, 0.0
        %v818 = vsel %vm816, %v443, 0.0
        %v819 = vpack.c.bf16 %v818, %v817
        %v821 = vsel %vm427, %v819, 0
        %823 = vmatpush.bf16.xpose.msra.mxu0 0
        %824 = vmatpush.bf16.xpose.msra.mxu0 0
        %825 = vmatpush.bf16.xpose.msra.mxu0 0
        %826 = vmatpush.bf16.xpose.msra.mxu0 0
        %827 = vmatpush.bf16.xpose.msra.mxu0 0
        %828 = vmatpush.bf16.xpose.msra.mxu0 0
        %829 = vmatpush.bf16.xpose.msra.mxu0 0
        %830 = vmatpush.bf16.xpose.msra.mxu0 %v461
        %831 = vmatmul.bf16.gmra.mxu0 %v821
        %v832 = vpop.f32.mrf.mxu0
        %v833 = vadd.f32 0.0, %v832
        %v834 = vpop.f32.mrf.mxu0
        %v835 = vadd.f32 0.0, %v834
        %836 = vdwg.mxu0
        loop: start=0, step=1, limit=13
        $region74: #{tpu_custom_call.1} parent=47 // loop_pre_header
          _
        $region75: #{tpu_custom_call.1} parent=47 // loop_header
          %s838 = sphi 0, %s842
          %p839 = scmp.ge.s32.totalorder %s838, 13
          %v843 = vphi %v833, %v855
          %v844 = vphi %v835, %v856
          %v845 = vphi 0.0, %v849
          %v846 = vphi 0.0, %v852
        $region76: #{tpu_custom_call.1} parent=47 // loop_header_branch
          %841 = sbr.rel (%p839) target = $region80
        $region77: #{tpu_custom_call.1} parent=47 // loop_body
          %v847 = vsel %vm502, %v843, -inf
          %848 = vmax.xlane.f32.xlu0 %v847
          %v849 = vpop.xlane.xlu0 %848
          %v850 = vsel %vm502, %v844, -inf
          %851 = vmax.xlane.f32.xlu0 %v850
          %v852 = vpop.xlane.xlu0 %851
          %vm853 = vcmp.ge.f32.partialorder %v843, %v849
          %vm854 = vcmp.ge.f32.partialorder %v844, %v852
          %v855 = vsel %vm853, -inf, %v843
          %v856 = vsel %vm854, -inf, %v844
        $region78: #{tpu_custom_call.1} parent=47 // loop_footer
          %s842 = sadd.s32 1, %s838
        $region79: #{tpu_custom_call.1} parent=47 // loop_footer_branch
          %837 = sbr.rel target = $region75
        $region80: #{tpu_custom_call.1} parent=47 // loop_exit
          _
        %vm857 = vcmp.ge.f32.partialorder %v833, %v845
        %vm858 = vcmp.ge.f32.partialorder %v835, %v846
        %v859 = vsel %vm857, %v833, 0.0
        %v860 = vsel %vm858, %v835, 0.0
        %v861 = vsel %vm502, %v859, -inf
        %862 = vmax.xlane.f32.xlu0 %v861
        %v863 = vpop.xlane.xlu0 %862
        %v864 = vsel %vm502, %v860, -inf
        %865 = vmax.xlane.f32.xlu0 %v864
        %v866 = vpop.xlane.xlu0 %865
        %v867 = vsub.f32 %v859, %v863
        %v868 = vsub.f32 %v860, %v866
        %v869 = vmul.f32 %v867, 1.442695
        %v870 = vpow.pop %v869
        %v871 = vmul.f32 %v868, 1.442695
        %v872 = vpow.pop %v871
        %v873 = vsel %vm502, %v870, 0.0
        %874 = vadd.xlane.f32.xlu0 %v873
        %v875 = vpop.xlane.xlu0 %874
        %v876 = vsel %vm502, %v872, 0.0
        %877 = vadd.xlane.f32.xlu0 %v876
        %v878 = vpop.xlane.xlu0 %877
        %v879 = vrcp.pop %v875
        %v880 = vmul.f32 %v875, %v879
        %v881 = vsub.f32 1.0, %v880
        %v882 = vmul.f32 %v879, %v881
        %v883 = vadd.f32 %v879, %v882
        %vm884 = vweird.f32 %v875
        %vm885 = vweird.f32 %v879
        %vm886 = vmor %vm884, %vm885
        %v887 = vsel %vm886, %v879, %v883
        %v888 = vand.u32 2147483647, %v875
        %vm889 = vcmp.eq.f32.partialorder %v888, 8.507059e+37
        %v890 = vand.u32 %v875, 2147483648
        %v891 = vor.u32 1.1754944e-38, %v890
        %v892 = vsel %vm889, %v891, %v887
        %v893 = vrcp.pop %v878
        %v894 = vmul.f32 %v878, %v893
        %v895 = vsub.f32 1.0, %v894
        %v896 = vmul.f32 %v893, %v895
        %v897 = vadd.f32 %v893, %v896
        %vm898 = vweird.f32 %v878
        %vm899 = vweird.f32 %v893
        %vm900 = vmor %vm898, %vm899
        %v901 = vsel %vm900, %v893, %v897
        %v902 = vand.u32 2147483647, %v878
        %vm903 = vcmp.eq.f32.partialorder %v902, 8.507059e+37
        %v904 = vand.u32 %v878, 2147483648
        %v905 = vor.u32 1.1754944e-38, %v904
        %v906 = vsel %vm903, %v905, %v901
        %v907 = vmul.f32 %v870, %v892
        %v908 = vmul.f32 %v872, %v906
        %v909 = vsel %vm816, %v554, 0.0
        %v910 = vsel %vm816, %v556, 0.0
        %v911 = vpack.c.bf16 %v910, %v909
        %v912 = vpack.c.bf16 %v908, %v907
        %v914 = vsel %vm502, %v912, 0
        %916 = vmatpush.bf16.msra.mxu0 0
        %917 = vmatpush.bf16.msra.mxu0 0
        %918 = vmatpush.bf16.msra.mxu0 0
        %919 = vmatpush.bf16.msra.mxu0 0
        %920 = vmatpush.bf16.msra.mxu0 0
        %921 = vmatpush.bf16.msra.mxu0 0
        %922 = vmatpush.bf16.msra.mxu0 0
        %923 = vmatpush.bf16.msra.mxu0 %v911
        %924 = vmatmul.bf16.gmra.mxu0 %v914
        %v925 = vpop.f32.mrf.mxu0
        %v926 = vadd.f32 0.0, %v925
        %v927 = vpop.f32.mrf.mxu0
        %v928 = vadd.f32 0.0, %v927
        %929 = vdwg.mxu0
        %v930 = vadd.f32 %v812, %v926
        %v931 = vadd.f32 %v813, %v928
        %v932 = vld [vmem:[%s393] sm:$0x1f]
        %v933 = vadd.f32 %v404, %v930
        %v934 = vadd.f32 %v405, %v931
        %v935 = vsel %vm427, %v933, 0.0
        %936 = vadd.xlane.f32.xlu0 %v935
        %v937 = vpop.xlane.xlu0 %936
        %v938 = vsel %vm427, %v934, 0.0
        %939 = vadd.xlane.f32.xlu0 %v938
        %v940 = vpop.xlane.xlu0 %939
        %v941 = vrcp.pop 32.0
        %v942 = vmul.f32 32.0, %v941
        %v943 = vsub.f32 1.0, %v942
        %v944 = vmul.f32 %v941, %v943
        %v945 = vadd.f32 %v941, %v944
        %vm946 = vweird.f32 %v941
        %v947 = vsel %vm946, %v941, %v945
        %v948 = vmul.f32 %v937, %v947
        %v949 = vmul.f32 %v940, %v947
        %v950 = vsub.f32 %v933, %v948
        %v951 = vsub.f32 %v934, %v949
        %v952 = vmul.f32 %v950, %v950
        %v953 = vmul.f32 %v951, %v951
        %v954 = vsel %vm427, %v952, 0.0
        %955 = vadd.xlane.f32.xlu0 %v954
        %v956 = vpop.xlane.xlu0 %955
        %v957 = vsel %vm427, %v953, 0.0
        %958 = vadd.xlane.f32.xlu0 %v957
        %v959 = vpop.xlane.xlu0 %958
        %v960 = vmul.f32 %v956, %v947
        %v961 = vmul.f32 %v959, %v947
        %v962 = vadd.f32 %v960, 1e-05
        %v963 = vadd.f32 %v961, 1e-05
        %v964 = vrsqrt.pop %v962
        %v965 = vmul.f32 %v964, %v962
        %v966 = vmul.f32 %v965, %v964
        %v967 = vmul.f32 0.5, %v966
        %v968 = vsub.f32 1.5, %v967
        %v969 = vmul.f32 %v964, %v968
        %vm970 = vweird.f32 %v962
        %vm971 = vweird.f32 %v964
        %vm972 = vmor %vm970, %vm971
        %v973 = vsel %vm972, %v964, %v969
        %v974 = vrsqrt.pop %v963
        %v975 = vmul.f32 %v974, %v963
        %v976 = vmul.f32 %v975, %v974
        %v977 = vmul.f32 0.5, %v976
        %v978 = vsub.f32 1.5, %v977
        %v979 = vmul.f32 %v974, %v978
        %vm980 = vweird.f32 %v963
        %vm981 = vweird.f32 %v974
        %vm982 = vmor %vm980, %vm981
        %v983 = vsel %vm982, %v974, %v979
        %v984 = vmul.f32 %v950, %v973
        %v985 = vmul.f32 %v951, %v983
        %v986 = vperm.slane %v932, 1
        %v987 = vmul.f32 %v984, %v986
        %v988 = vmul.f32 %v985, %v986
        %v989 = vperm.slane %v932, 2
        %v990 = vadd.f32 %v987, %v989
        %v991 = vadd.f32 %v988, %v989
        %v992 = vpack.c.bf16 %v991, %v990
        %v993 = vld [vmem:[%s381] sm:$0xf]
        %v994 = vld [vmem:[%s381 + $0x4] sm:$0xf]
        %v995 = vld [vmem:[%s381 + $0x8] sm:$0xf]
        %v996 = vld [vmem:[%s381 + $0xc] sm:$0xf]
        %v997 = vld [vmem:[%s384] sm:$0x1]
        %v999 = vperm.slane %v997, 0
        %v1005 = vunpack.c.l.b16 %v993
        %v1006 = vunpack.c.l.b16 %v994
        %v1007 = vunpack.c.l.b16 %v995
        %v1008 = vunpack.c.l.b16 %v996
        %v1009 = vpack.c.b16 %v1006, %v1005
        %v1010 = vpack.c.b16 %v1008, %v1007
        %v1014 = vsel %vm427, %v992, 0
        %1016 = vmatpush.bf16.msra.mxu0 0
        %1017 = vmatpush.bf16.msra.mxu0 0
        %1018 = vmatpush.bf16.msra.mxu0 0
        %1019 = vmatpush.bf16.msra.mxu0 0
        %1020 = vmatpush.bf16.msra.mxu0 0
        %1021 = vmatpush.bf16.msra.mxu0 0
        %1022 = vmatpush.bf16.msra.mxu0 %v1010
        %1023 = vmatpush.bf16.msra.mxu0 %v1009
        %1024 = vmatmul.bf16.gmra.mxu0 %v1014
        %v1025 = vpop.f32.mrf.mxu0
        %v1026 = vadd.f32 %v999, %v1025
        %v1027 = vpop.f32.mrf.mxu0
        %v1028 = vadd.f32 %v999, %v1027
        %1029 = vdwg.mxu0
        %v1030 = vmul.f32 %v1026, 0.5
        %v1031 = vmul.f32 %v1028, 0.5
        %v1032 = vmul.f32 %v1026, 0.70710677
        %v1033 = vmul.f32 %v1028, 0.70710677
        %v1034 = vand.u32 2147483647, %v1032
        %v1035 = vand.u32 2147483647, %v1033
        %v1036 = vmul.f32 %v1034, 0.3275911
        %v1037 = vmul.f32 %v1035, 0.3275911
        %v1038 = vadd.f32 %v1036, 1.0
        %v1039 = vadd.f32 %v1037, 1.0
        %v1040 = vrcp.pop %v1038
        %v1041 = vmul.f32 %v1038, %v1040
        %v1042 = vsub.f32 1.0, %v1041
        %v1043 = vmul.f32 %v1040, %v1042
        %v1044 = vadd.f32 %v1040, %v1043
        %vm1045 = vweird.f32 %v1038
        %vm1046 = vweird.f32 %v1040
        %vm1047 = vmor %vm1045, %vm1046
        %v1048 = vsel %vm1047, %v1040, %v1044
        %v1049 = vand.u32 2147483647, %v1038
        %vm1050 = vcmp.eq.f32.partialorder %v1049, 8.507059e+37
        %v1051 = vand.u32 %v1038, 2147483648
        %v1052 = vor.u32 1.1754944e-38, %v1051
        %v1053 = vsel %vm1050, %v1052, %v1048
        %v1054 = vmul.f32 1.0, %v1053
        %v1055 = vrcp.pop %v1039
        %v1056 = vmul.f32 %v1039, %v1055
        %v1057 = vsub.f32 1.0, %v1056
        %v1058 = vmul.f32 %v1055, %v1057
        %v1059 = vadd.f32 %v1055, %v1058
        %vm1060 = vweird.f32 %v1039
        %vm1061 = vweird.f32 %v1055
        %vm1062 = vmor %vm1060, %vm1061
        %v1063 = vsel %vm1062, %v1055, %v1059
        %v1064 = vand.u32 2147483647, %v1039
        %vm1065 = vcmp.eq.f32.partialorder %v1064, 8.507059e+37
        %v1066 = vand.u32 %v1039, 2147483648
        %v1067 = vor.u32 1.1754944e-38, %v1066
        %v1068 = vsel %vm1065, %v1067, %v1063
        %v1069 = vmul.f32 1.0, %v1068
        %v1070 = vmul.f32 %v1054, 1.0614054
        %v1071 = vmul.f32 %v1069, 1.0614054
        %v1072 = vadd.f32 %v1070, -1.4531521
        %v1073 = vadd.f32 %v1071, -1.4531521
        %v1074 = vmul.f32 %v1072, %v1054
        %v1075 = vmul.f32 %v1073, %v1069
        %v1076 = vadd.f32 %v1074, 1.4214138
        %v1077 = vadd.f32 %v1075, 1.4214138
        %v1078 = vmul.f32 %v1076, %v1054
        %v1079 = vmul.f32 %v1077, %v1069
        %v1080 = vadd.f32 %v1078, -0.28449672
        %v1081 = vadd.f32 %v1079, -0.28449672
        %v1082 = vmul.f32 %v1080, %v1054
        %v1083 = vmul.f32 %v1081, %v1069
        %v1084 = vadd.f32 %v1082, 0.2548296
        %v1085 = vadd.f32 %v1083, 0.2548296
        %v1086 = vmul.f32 %v1084, %v1054
        %v1087 = vmul.f32 %v1085, %v1069
        %v1088 = vsub.f32 0.0, %v1034
        %v1089 = vsub.f32 0.0, %v1035
        %v1090 = vmul.f32 %v1088, %v1034
        %v1091 = vmul.f32 %v1089, %v1035
        %v1092 = vmul.f32 %v1090, 1.442695
        %v1093 = vpow.pop %v1092
        %v1094 = vmul.f32 %v1091, 1.442695
        %v1095 = vpow.pop %v1094
        %v1096 = vmul.f32 %v1086, %v1093
        %v1097 = vmul.f32 %v1087, %v1095
        %v1098 = vsub.f32 1.0, %v1096
        %v1099 = vsub.f32 1.0, %v1097
        %vm1100 = vcmp.ge.f32.partialorder %v1032, 0.0
        %vm1101 = vcmp.ge.f32.partialorder %v1033, 0.0
        %v1102 = vsub.f32 0.0, %v1098
        %v1103 = vsub.f32 0.0, %v1099
        %v1104 = vsel %vm1100, %v1098, %v1102
        %v1105 = vsel %vm1101, %v1099, %v1103
        %v1106 = vadd.f32 %v1104, 1.0
        %v1107 = vadd.f32 %v1105, 1.0
        %v1108 = vmul.f32 %v1030, %v1106
        %v1109 = vmul.f32 %v1031, %v1107
        %v1110 = vpack.c.bf16 %v1109, %v1108
        %v1111 = vld [vmem:[%s389] sm:$0xf]
        %v1112 = vld [vmem:[%s389 + $0x4] sm:$0xf]
        %v1113 = vld [vmem:[%s389 + $0x8] sm:$0xf]
        %v1114 = vld [vmem:[%s389 + $0xc] sm:$0xf]
        %v1115 = vld [vmem:[%s389 + $0x10] sm:$0xf]
        %v1116 = vld [vmem:[%s389 + $0x14] sm:$0xf]
        %v1117 = vld [vmem:[%s389 + $0x18] sm:$0xf]
        %v1118 = vld [vmem:[%s389 + $0x1c] sm:$0xf]
        %v1119 = vld [vmem:[%s389 + $0x20] sm:$0xf]
        %v1120 = vld [vmem:[%s389 + $0x24] sm:$0xf]
        %v1121 = vld [vmem:[%s389 + $0x28] sm:$0xf]
        %v1122 = vld [vmem:[%s389 + $0x2c] sm:$0xf]
        %v1123 = vld [vmem:[%s389 + $0x30] sm:$0xf]
        %v1124 = vld [vmem:[%s389 + $0x34] sm:$0xf]
        %v1125 = vld [vmem:[%s389 + $0x38] sm:$0xf]
        %v1126 = vld [vmem:[%s389 + $0x3c] sm:$0xf]
        %v1127 = vperm.slane %v932, 0
        %v1144 = vunpack.c.l.b16 %v1111
        %v1145 = vunpack.c.l.b16 %v1112
        %v1146 = vunpack.c.l.b16 %v1113
        %v1147 = vunpack.c.l.b16 %v1114
        %v1148 = vunpack.c.l.b16 %v1115
        %v1149 = vunpack.c.l.b16 %v1116
        %v1150 = vunpack.c.l.b16 %v1117
        %v1151 = vunpack.c.l.b16 %v1118
        %v1152 = vunpack.c.l.b16 %v1119
        %v1153 = vunpack.c.l.b16 %v1120
        %v1154 = vunpack.c.l.b16 %v1121
        %v1155 = vunpack.c.l.b16 %v1122
        %v1156 = vunpack.c.l.b16 %v1123
        %v1157 = vunpack.c.l.b16 %v1124
        %v1158 = vunpack.c.l.b16 %v1125
        %v1159 = vunpack.c.l.b16 %v1126
        %v1160 = vpack.c.b16 %v1145, %v1144
        %v1161 = vpack.c.b16 %v1147, %v1146
        %v1162 = vpack.c.b16 %v1149, %v1148
        %v1163 = vpack.c.b16 %v1151, %v1150
        %v1164 = vpack.c.b16 %v1153, %v1152
        %v1165 = vpack.c.b16 %v1155, %v1154
        %v1166 = vpack.c.b16 %v1157, %v1156
        %v1167 = vpack.c.b16 %v1159, %v1158
        %1176 = vmatpush.bf16.msra.mxu0 %v1167
        %1177 = vmatpush.bf16.msra.mxu0 %v1166
        %1178 = vmatpush.bf16.msra.mxu0 %v1165
        %1179 = vmatpush.bf16.msra.mxu0 %v1164
        %1180 = vmatpush.bf16.msra.mxu0 %v1163
        %1181 = vmatpush.bf16.msra.mxu0 %v1162
        %1182 = vmatpush.bf16.msra.mxu0 %v1161
        %1183 = vmatpush.bf16.msra.mxu0 %v1160
        %1184 = vmatmul.bf16.gmra.mxu0 %v1110
        %v1185 = vpop.f32.mrf.mxu0
        %v1186 = vadd.f32 %v1127, %v1185
        %v1187 = vpop.f32.mrf.mxu0
        %v1188 = vadd.f32 %v1127, %v1187
        %1189 = vdwg.mxu0
        %v1190 = vadd.f32 %v990, %v1186
        %v1191 = vadd.f32 %v991, %v1188
        %v1192 = vsel %vm427, %v1190, 0.0
        %1193 = vadd.xlane.f32.xlu0 %v1192
        %v1194 = vpop.xlane.xlu0 %1193
        %v1195 = vsel %vm427, %v1191, 0.0
        %1196 = vadd.xlane.f32.xlu0 %v1195
        %v1197 = vpop.xlane.xlu0 %1196
        %v1198 = vmul.f32 %v1194, %v947
        %v1199 = vmul.f32 %v1197, %v947
        %v1200 = vsub.f32 %v1190, %v1198
        %v1201 = vsub.f32 %v1191, %v1199
        %v1202 = vmul.f32 %v1200, %v1200
        %v1203 = vmul.f32 %v1201, %v1201
        %v1204 = vsel %vm427, %v1202, 0.0
        %1205 = vadd.xlane.f32.xlu0 %v1204
        %v1206 = vpop.xlane.xlu0 %1205
        %v1207 = vsel %vm427, %v1203, 0.0
        %1208 = vadd.xlane.f32.xlu0 %v1207
        %v1209 = vpop.xlane.xlu0 %1208
        %v1210 = vmul.f32 %v1206, %v947
        %v1211 = vmul.f32 %v1209, %v947
        %v1212 = vadd.f32 %v1210, 1e-05
        %v1213 = vadd.f32 %v1211, 1e-05
        %v1214 = vrsqrt.pop %v1212
        %v1215 = vmul.f32 %v1214, %v1212
        %v1216 = vmul.f32 %v1215, %v1214
        %v1217 = vmul.f32 0.5, %v1216
        %v1218 = vsub.f32 1.5, %v1217
        %v1219 = vmul.f32 %v1214, %v1218
        %vm1220 = vweird.f32 %v1212
        %vm1221 = vweird.f32 %v1214
        %vm1222 = vmor %vm1220, %vm1221
        %v1223 = vsel %vm1222, %v1214, %v1219
        %v1224 = vrsqrt.pop %v1213
        %v1225 = vmul.f32 %v1224, %v1213
        %v1226 = vmul.f32 %v1225, %v1224
        %v1227 = vmul.f32 0.5, %v1226
        %v1228 = vsub.f32 1.5, %v1227
        %v1229 = vmul.f32 %v1224, %v1228
        %vm1230 = vweird.f32 %v1213
        %vm1231 = vweird.f32 %v1224
        %vm1232 = vmor %vm1230, %vm1231
        %v1233 = vsel %vm1232, %v1224, %v1229
        %v1234 = vmul.f32 %v1200, %v1223
        %v1235 = vmul.f32 %v1201, %v1233
        %v1236 = vperm.slane %v932, 3
        %v1237 = vmul.f32 %v1234, %v1236
        %v1238 = vmul.f32 %v1235, %v1236
        %v1239 = vperm.slane %v932, 4
        %v1240 = vadd.f32 %v1237, %v1239
        %v1241 = vadd.f32 %v1238, %v1239
        %1242 = vst.msk [vmem:[%s363] sm:$0xff] %vm427, %v1240
        %1243 = vst.msk [vmem:[%s363 + $0x8] sm:$0xff] %vm427, %v1241
        %s1244 = sand.u32 %s223, 1
        %s1245 = scalar_lea.sflag [#allocation3], %s1244
        %s1246 = sand.u32 %s223, 1
        %s1247 = smul.addr %s1246, 16
        %s1248 = scalar_lea.vmem [#allocation2], %s1247
        // Predicated region
        $region81: #{tpu_custom_call.1} parent=47 // pred_check
          %p1249 = pneg %p233
        $region82: #{tpu_custom_call.1} parent=47 // pred_check_branch
          %1251 = sbr.rel (%p1249) target = $region84
        $region83: #{tpu_custom_call.1} parent=47 // pred_region
          %1253 = vsyncadd %s1245, 0
          %s1254 = smul.addr %s25, 2
          %s1255 = smul.addr %s1254, 8
          %s1256 = scalar_lea.hbm %s7, %s1255
          %s1257 = sshll.u32 %s1248, 4
          %s1258 = int_to_ptr.vmem [resolvable:$true] %s1257
          %s1259 = sshll.u32 %s1256, 4
          %s1260 = int_to_ptr.hbm [resolvable:$true] %s1259
          %1265 = dma.vmem_to_hbm [thread:$0]  %s1258, 256, %s1260, %s1245, 128, 128, 8
        $region84: #{tpu_custom_call.1} parent=47 // pred_fallthru
          _
      $region48: #{tpu_custom_call.1} parent=5 // pred_fallthru
        _
      %p1266 = scmp.le.s32.totalorder 2, %s16
      // Predicated region
      $region85: #{tpu_custom_call.1} parent=5 // pred_check
        %p1267 = pneg %p1266
      $region86: #{tpu_custom_call.1} parent=5 // pred_check_branch
        %1269 = sbr.rel (%p1267) target = $region88
      $region87: #{tpu_custom_call.1} parent=5 // pred_region
        %s1270 = ssub.s32 %s16, 2
        // Predicated region
        $region89: #{tpu_custom_call.1} parent=87 // pred_check
          %p1271 = pneg %p239
        $region90: #{tpu_custom_call.1} parent=87 // pred_check_branch
          %1273 = sbr.rel (%p1271) target = $region92
        $region91: #{tpu_custom_call.1} parent=87 // pred_region
          %s1274 = sand.u32 %s224, 1
          %s1275 = scalar_lea.sflag [#allocation3], %s1274
          %s1276 = sand.u32 %s224, 1
          %s1277 = smul.addr %s1276, 16
          %s1278 = scalar_lea.vmem [#allocation2], %s1277
          %1280 = dma.done %s1275, 256
        $region92: #{tpu_custom_call.1} parent=87 // pred_fallthru
          _
      $region88: #{tpu_custom_call.1} parent=5 // pred_fallthru
        _
    $region6: #{tpu_custom_call.1} parent=1 // loop_footer
      %s20 = sadd.s32 1, %s16
    $region7: #{tpu_custom_call.1} parent=1 // loop_footer_branch
      %15 = sbr.rel target = $region3
    $region8: #{tpu_custom_call.1} parent=1 // loop_exit
      _
    %1281 = vsyncpa [#allocation3], 1
    %s1282 = scalar_lea.sflag [#allocation3], 1
    %1283 = vsyncpa %s1282, 1

</llo_original>
